<compile_context>
chip_gen: v5e
topology: v5e:2x2
jax: 0.10.0
libtpu: 0.0.40
codegen_flags: <defaults>
</compile_context>

<pallas_src>
import functools

import jax
import jax.numpy as jnp
from jax.experimental import pallas as pl
from jax.experimental.pallas import tpu as pltpu

EPS = 1e-5
_VMEM_LIMIT = 32 * 1024 * 1024          # portable budget (v7x physical VMEM is 64 MiB)


def _gelu_tanh(x):
    # tanh-approximation GELU: the tanh goes to the EUP slot (free alongside MXU/VPU).
    c = 0.7978845608028654              # sqrt(2/pi)
    return 0.5 * x * (1.0 + jnp.tanh(c * (x + 0.044715 * x * x * x)))


# ---------------- Pallas kernels ----------------

def node_stats_kernel(x_ref, s_ref, ss_ref):
    """Per-node partial sums for BatchNorm statistics.  x_ref: (nt, T, D)."""
    x = x_ref[...].astype(jnp.float32)
    s = jnp.sum(jnp.sum(x, axis=2), axis=1, keepdims=True)          # (nt, 1)
    ss = jnp.sum(jnp.sum(x * x, axis=2), axis=1, keepdims=True)     # (nt, 1)
    s_ref[...] = s.reshape(s_ref.shape)
    ss_ref[...] = ss.reshape(ss_ref.shape)


def affine_kernel(x_ref, a_ref, c_ref, o_ref):
    """Per-node affine (used for the final Norm1): o = a*x + c."""
    o_ref[...] = a_ref[...] * x_ref[...] + c_ref[...]


def fused_bn_ff_kernel(x_ref, a1_ref, c1_ref, ha_ref, hc_ref,
                       w1_ref, b1_ref, w2_ref, b2_ref,
                       o_ref, s_ref, ss_ref):
    """Fused EncoderLayer body + stats of the output.

    x_ref:                (nt, T, D)  activation tile (natural layout)
    a1/c1/ha/hc_ref:      (nt, 1, 1)  per-node affine coefficients
        x2 = a1*x + c1      (= x + dropout_1(conv(BN1(x))), conv/dropout identity)
        h2 = ha*x + hc      (= BN2(x2), batch stats folded analytically)
    w1/b1/w2/b2:          FeedForward weights (VMEM-resident: constant block index)
    o_ref:                (nt, T, D)  out = x2 + dropout_2(FF(h2))
    s/ss_ref:             (nt, 1, 1)  per-node sum / sum-of-squares of the OUTPUT
                          (feeds the next layer's / final norm's BatchNorm stats,
                          so no separate stats read pass over `out` is needed).
    """
    nt, T, D = x_ref.shape
    x = x_ref[...]
    x2 = a1_ref[...] * x + c1_ref[...]
    h2 = ha_ref[...] * x + hc_ref[...]

    h2f = h2.reshape(nt * T, D)                       # sublane merge, no lane relayout
    z = jnp.dot(h2f, w1_ref[...], preferred_element_type=jnp.float32) + b1_ref[...]
    g = _gelu_tanh(z)
    y = jnp.dot(g, w2_ref[...], preferred_element_type=jnp.float32) + b2_ref[...]

    out = x2 + y.reshape(nt, T, D)
    o_ref[...] = out.astype(o_ref.dtype)

    of = out.astype(jnp.float32)
    s = jnp.sum(jnp.sum(of, axis=2), axis=1, keepdims=True)         # (nt, 1)
    ss = jnp.sum(jnp.sum(of * of, axis=2), axis=1, keepdims=True)   # (nt, 1)
    s_ref[...] = s.reshape(s_ref.shape)
    ss_ref[...] = ss.reshape(ss_ref.shape)


# ---------------- pallas_call wrappers ----------------

def _compiler_params():
    return pltpu.CompilerParams(dimension_semantics=("parallel",),
                                vmem_limit_bytes=_VMEM_LIMIT)


def _pick_node_tile(N, per_node_bytes, target_bytes):
    """Largest divisor of N whose x-block is about `target_bytes` (keeps the
    pipeline double-buffered and VMEM bounded, independent of problem size)."""
    cap = max(1, target_bytes // max(per_node_bytes, 1))
    if N <= cap:
        return N
    for nt in range(int(cap), 0, -1):
        if N % nt == 0:
            return nt
    return N


def _node_stats_call(x, nt):
    N, T, D = x.shape
    node_out = pl.BlockSpec((nt, 1, 1), lambda i: (i, 0, 0))
    return pl.pallas_call(
        node_stats_kernel,
        out_shape=(jax.ShapeDtypeStruct((N, 1, 1), jnp.float32),
                   jax.ShapeDtypeStruct((N, 1, 1), jnp.float32)),
        grid=(N // nt,),
        in_specs=[pl.BlockSpec((nt, T, D), lambda i: (i, 0, 0))],
        out_specs=(node_out, node_out),
        compiler_params=_compiler_params(),
    )(x)


def _affine_call(x, a_n, c_n, nt):
    N, T, D = x.shape
    node_spec = pl.BlockSpec((nt, 1, 1), lambda i: (i, 0, 0))
    return pl.pallas_call(
        affine_kernel,
        out_shape=jax.ShapeDtypeStruct((N, T, D), x.dtype),
        grid=(N // nt,),
        in_specs=[pl.BlockSpec((nt, T, D), lambda i: (i, 0, 0)), node_spec, node_spec],
        out_specs=pl.BlockSpec((nt, T, D), lambda i: (i, 0, 0)),
        compiler_params=_compiler_params(),
    )(x, a_n, c_n)


def _fused_bn_ff_call(x, pn, w1, b1, w2, b2, nt):
    N, T, D = x.shape
    d_ff = w1.shape[1]
    a1_n, c1_n, ha_n, hc_n = pn
    node_spec = pl.BlockSpec((nt, 1, 1), lambda i: (i, 0, 0))
    return pl.pallas_call(
        fused_bn_ff_kernel,
        out_shape=(jax.ShapeDtypeStruct((N, T, D), x.dtype),
                   jax.ShapeDtypeStruct((N, 1, 1), jnp.float32),
                   jax.ShapeDtypeStruct((N, 1, 1), jnp.float32)),
        grid=(N // nt,),
        in_specs=[pl.BlockSpec((nt, T, D), lambda i: (i, 0, 0)),
                  node_spec, node_spec, node_spec, node_spec,
                  pl.BlockSpec((D, d_ff), lambda i: (0, 0)),
                  pl.BlockSpec((1, d_ff), lambda i: (0, 0)),
                  pl.BlockSpec((d_ff, D), lambda i: (0, 0)),
                  pl.BlockSpec((1, D), lambda i: (0, 0))],
        out_specs=(pl.BlockSpec((nt, T, D), lambda i: (i, 0, 0)),
                   node_spec, node_spec),
        compiler_params=_compiler_params(),
    )(x, a1_n, c1_n, ha_n, hc_n, w1, b1, w2, b2)


# ---------------- forward pass (tiny O(C)/O(N) glue in plain JAX) ----------------

def _channel_stats_from_sums(s, ss, B, C, T, D):
    """Per-channel mean / biased var of a (B*C, T, D) tensor from per-node sums."""
    s = s.reshape(B, C).sum(axis=0)                  # node n = b*C + c  -> channel c
    ss = ss.reshape(B, C).sum(axis=0)
    m = float(B * T * D)
    mean = s / m
    var = jnp.maximum(ss / m - mean * mean, 0.0)
    return mean, var


def _per_node(v, B, N):
    # (C,) per-channel -> (N,1,1) per-node coefficients (channel of node n is n % C).
    return jnp.tile(v, B).reshape(N, 1, 1).astype(jnp.float32)


def encoder_layer_forward(x, s_in, ss_in, p, *, batch, num_nodes):
    """One EncoderLayer.forward (graph conv and dropouts are identity placeholders).

    s_in / ss_in are the per-node sum / sum-of-squares of `x` (carried from the
    previous layer's fused kernel, or from the initial stats pass).
    Returns (out, s_out, ss_out) where the stats describe `out`.
    """
    N, T, D = x.shape
    B, C = batch, num_nodes
    assert N == B * C
    per_node_bytes = T * D * x.dtype.itemsize
    nt_ff = _pick_node_tile(N, per_node_bytes, target_bytes=1 << 20)

    # ---- BN1 batch statistics (from carried per-node sums; no HBM pass) ----
    mean1, var1 = _channel_stats_from_sums(s_in, ss_in, B, C, T, D)
    inv1 = jax.lax.rsqrt(var1 + EPS)

    g1, be1 = p["bn1_gamma"], p["bn1_beta"]
    g2, be2 = p["bn2_gamma"], p["bn2_beta"]

    # x2 = x + BN1(x) = a1*x + c1 (per channel).  Because the conv is an identity
    # placeholder, BN2's batch statistics of x2 follow analytically from BN1's.
    a1 = 1.0 + g1 * inv1
    c1 = be1 - g1 * inv1 * mean1
    mean2 = a1 * mean1 + c1
    var2 = a1 * a1 * var1
    inv2 = jax.lax.rsqrt(var2 + EPS)
    a2 = g2 * inv2
    c2 = be2 - a2 * mean2
    ha = a2 * a1                                    # h2 = BN2(x2) = ha*x + hc
    hc = a2 * c1 + c2

    pn = (_per_node(a1, B, N), _per_node(c1, B, N),
          _per_node(ha, B, N), _per_node(hc, B, N))

    # ---- fused BN1/BN2 fold + FeedForward + residual + output stats ----
    out, s_out, ss_out = _fused_bn_ff_call(x, pn, p["w1"], p["b1"], p["w2"], p["b2"],
                                           nt_ff)
    return out, s_out, ss_out


def encoder1_forward(x, params, *, batch, num_nodes):
    """Encoder1.forward: alternate layers1[i]/layers2[i], then the final Norm1."""
    N, T, D = x.shape
    B, C = batch, num_nodes
    assert N == B * C
    per_node_bytes = T * D * x.dtype.itemsize
    nt_stats = _pick_node_tile(N, per_node_bytes, target_bytes=2 << 20)

    # Initial per-node stats of the input (only stats pass over raw activations).
    s, ss = _node_stats_call(x, nt_stats)

    for lp1, lp2 in zip(params["layers1"], params["layers2"]):
        x, s, ss = encoder_layer_forward(x, s, ss, lp1, batch=batch, num_nodes=num_nodes)
        x, s, ss = encoder_layer_forward(x, s, ss, lp2, batch=batch, num_nodes=num_nodes)

    # Final Norm1: statistics come from the last fused kernel's stats outputs.
    mean, var = _channel_stats_from_sums(s, ss, B, C, T, D)
    inv = jax.lax.rsqrt(var + EPS)
    a = params["norm_gamma"] * inv
    c = params["norm_beta"] - a * mean
    nt = _pick_node_tile(N, per_node_bytes, target_bytes=2 << 20)
    return _affine_call(x, _per_node(a, B, N), _per_node(c, B, N), nt)


# ---------------- parameters & pure-JAX reference ----------------

def init_layer_params(key, num_nodes, dim, d_ff=128):
    ks = jax.random.split(key, 8)
    C = num_nodes
    return dict(
        bn1_gamma=1.0 + 0.1 * jax.random.normal(ks[0], (C,)),
        bn1_beta=0.1 * jax.random.normal(ks[1], (C,)),
        bn2_gamma=1.0 + 0.1 * jax.random.normal(ks[2], (C,)),
        bn2_beta=0.1 * jax.random.normal(ks[3], (C,)),
        # nn.Linear weights stored pre-transposed as (in, out).
        w1=0.05 * jax.random.normal(ks[4], (dim, d_ff)),
        b1=0.05 * jax.random.normal(ks[5], (1, d_ff)),
        w2=0.05 * jax.random.normal(ks[6], (d_ff, dim)),
        b2=0.05 * jax.random.normal(ks[7], (1, dim)),
    )


def init_encoder_params(key, num_nodes, dim, num_layer, d_ff=128):
    keys = jax.random.split(key, 2 * num_layer + 1)
    layers1 = [init_layer_params(keys[i], num_nodes, dim, d_ff) for i in range(num_layer)]
    layers2 = [init_layer_params(keys[num_layer + i], num_nodes, dim, d_ff)
               for i in range(num_layer)]
    kf = jax.random.split(keys[-1], 2)
    return dict(layers1=layers1, layers2=layers2,
                norm_gamma=1.0 + 0.1 * jax.random.normal(kf[0], (num_nodes,)),
                norm_beta=0.1 * jax.random.normal(kf[1], (num_nodes,)))


def _bn_ref(x, gamma, beta, B, C):
    N, T, D = x.shape
    x4 = x.reshape(B, C, T, D)
    mean = x4.mean(axis=(0, 2, 3), keepdims=True)
    var = ((x4 - mean) ** 2).mean(axis=(0, 2, 3), keepdims=True)
    out = ((x4 - mean) * jax.lax.rsqrt(var + EPS) * gamma.reshape(1, C, 1, 1)
           + beta.reshape(1, C, 1, 1))
    return out.reshape(N, T, D)


def encoder_layer_reference(x, p, B, C):
    N, T, D = x.shape
    h = _bn_ref(x, p["bn1_gamma"], p["bn1_beta"], B, C)      # conv = identity
    x2 = x + h                                               # dropout_1 = identity
    h2 = _bn_ref(x2, p["bn2_gamma"], p["bn2_beta"], B, C)
    z = h2.reshape(-1, D) @ p["w1"] + p["b1"]
    y = _gelu_tanh(z) @ p["w2"] + p["b2"]
    return x2 + y.reshape(N, T, D)                           # dropout_2 = identity


def encoder1_reference(x, params, B, C):
    for lp1, lp2 in zip(params["layers1"], params["layers2"]):
        x = encoder_layer_reference(x, lp1, B, C)
        x = encoder_layer_reference(x, lp2, B, C)
    return _bn_ref(x, params["norm_gamma"], params["norm_beta"], B, C)


if __name__ == "__main__":
    batch, num_nodes, seq, dim, num_layer = 2, 4, 8, 32, 2   # N = batch*num_nodes = 8
    key = jax.random.PRNGKey(0)
    kx, kp = jax.random.split(key)
    x = jax.random.normal(kx, (batch * num_nodes, seq, dim), dtype=jnp.float32)
    params = init_encoder_params(kp, num_nodes, dim, num_layer)

    fwd = jax.jit(functools.partial(encoder1_forward,
                                    batch=batch, num_nodes=num_nodes))
    out = fwd(x, params)
    jax.block_until_ready(out)

    ref = encoder1_reference(x, params, batch, num_nodes)
    assert out.shape == x.shape and out.dtype == jnp.float32
    assert bool(jnp.all(jnp.isfinite(out)))
    max_err = float(jnp.max(jnp.abs(out - ref)))
    assert max_err < 2e-3, f"max abs err vs reference = {max_err}"
    print("KERNEL_OK")
</pallas_src>

<mosaic_0001>
module attributes {stable_mosaic.version = 11 : i64} {
  func.func @node_stats_kernel(%arg0: i32, %arg1: memref<8x8x32xf32, #tpu.memory_space<vmem>>, %arg2: memref<8x1x1xf32, #tpu.memory_space<vmem>>, %arg3: memref<8x1x1xf32, #tpu.memory_space<vmem>>) attributes {dimension_semantics = [#tpu.dimension_semantics<parallel>], iteration_bounds = array<i64: 1>, scalar_prefetch = 0 : i64, scratch_operands = 0 : i64, tpu.core_type = #tpu.core_type<tc>, window_params = [{transform_indices = @transform_0, window_bounds = array<i64: 8, 8, 32>}, {transform_indices = @transform_1, window_bounds = array<i64: 8, 1, 1>}, {transform_indices = @transform_2, window_bounds = array<i64: 8, 1, 1>}]} {
    %c0 = arith.constant 0 : index
    %c0_0 = arith.constant 0 : index
    %c0_1 = arith.constant 0 : index
    %0 = vector.load %arg1[%c0, %c0_0, %c0_1] : memref<8x8x32xf32, #tpu.memory_space<vmem>>, vector<8x8x32xf32>
    %cst = arith.constant dense<0.000000e+00> : vector<8x8xf32>
    %1 = vector.multi_reduction <add>, %0, %cst [2] : vector<8x8x32xf32> to vector<8x8xf32>
    %cst_2 = arith.constant dense<0.000000e+00> : vector<8xf32>
    %2 = vector.multi_reduction <add>, %1, %cst_2 [1] : vector<8x8xf32> to vector<8xf32>
    %3 = vector.shape_cast %2 : vector<8xf32> to vector<8x1xf32>
    %4 = arith.mulf %0, %0 : vector<8x8x32xf32>
    %cst_3 = arith.constant dense<0.000000e+00> : vector<8x8xf32>
    %5 = vector.multi_reduction <add>, %4, %cst_3 [2] : vector<8x8x32xf32> to vector<8x8xf32>
    %cst_4 = arith.constant dense<0.000000e+00> : vector<8xf32>
    %6 = vector.multi_reduction <add>, %5, %cst_4 [1] : vector<8x8xf32> to vector<8xf32>
    %7 = vector.shape_cast %6 : vector<8xf32> to vector<8x1xf32>
    %8 = vector.shape_cast %3 : vector<8x1xf32> to vector<8x1x1xf32>
    %c0_5 = arith.constant 0 : index
    %c0_6 = arith.constant 0 : index
    %c0_7 = arith.constant 0 : index
    %9 = vector.load %arg2[%c0_5, %c0_6, %c0_7] : memref<8x1x1xf32, #tpu.memory_space<vmem>>, vector<8x1x1xf32>
    tpu.vector_store %arg2[%c0_5, %c0_6, %c0_7], %8 {strides = array<i32>} : memref<8x1x1xf32, #tpu.memory_space<vmem>>, vector<8x1x1xf32>,
    %10 = vector.shape_cast %7 : vector<8x1xf32> to vector<8x1x1xf32>
    %c0_8 = arith.constant 0 : index
    %c0_9 = arith.constant 0 : index
    %c0_10 = arith.constant 0 : index
    %11 = vector.load %arg3[%c0_8, %c0_9, %c0_10] : memref<8x1x1xf32, #tpu.memory_space<vmem>>, vector<8x1x1xf32>
    tpu.vector_store %arg3[%c0_8, %c0_9, %c0_10], %10 {strides = array<i32>} : memref<8x1x1xf32, #tpu.memory_space<vmem>>, vector<8x1x1xf32>,
    return
  }
  func.func @transform_0(%arg0: i32) -> (i32, i32, i32) {
    %c0_i32 = arith.constant 0 : i32
    %c0_i32_0 = arith.constant 0 : i32
    %c0_i32_1 = arith.constant 0 : i32
    return %arg0, %c0_i32, %c0_i32_0 : i32, i32, i32
  }
  func.func @transform_1(%arg0: i32) -> (i32, i32, i32) {
    %c0_i32 = arith.constant 0 : i32
    %c0_i32_0 = arith.constant 0 : i32
    %c0_i32_1 = arith.constant 0 : i32
    return %arg0, %c0_i32, %c0_i32_0 : i32, i32, i32
  }
  func.func @transform_2(%arg0: i32) -> (i32, i32, i32) {
    %c0_i32 = arith.constant 0 : i32
    %c0_i32_0 = arith.constant 0 : i32
    %c0_i32_1 = arith.constant 0 : i32
    return %arg0, %c0_i32, %c0_i32_0 : i32, i32, i32
  }
}

module attributes {stable_mosaic.version = 11 : i64} {
  func.func @fused_bn_ff_kernel(%arg0: i32, %arg1: memref<8x8x32xf32, #tpu.memory_space<vmem>>, %arg2: memref<8x1x1xf32, #tpu.memory_space<vmem>>, %arg3: memref<8x1x1xf32, #tpu.memory_space<vmem>>, %arg4: memref<8x1x1xf32, #tpu.memory_space<vmem>>, %arg5: memref<8x1x1xf32, #tpu.memory_space<vmem>>, %arg6: memref<32x128xf32, #tpu.memory_space<vmem>>, %arg7: memref<1x128xf32, #tpu.memory_space<vmem>>, %arg8: memref<128x32xf32, #tpu.memory_space<vmem>>, %arg9: memref<1x32xf32, #tpu.memory_space<vmem>>, %arg10: memref<8x8x32xf32, #tpu.memory_space<vmem>>, %arg11: memref<8x1x1xf32, #tpu.memory_space<vmem>>, %arg12: memref<8x1x1xf32, #tpu.memory_space<vmem>>) attributes {dimension_semantics = [#tpu.dimension_semantics<parallel>], iteration_bounds = array<i64: 1>, scalar_prefetch = 0 : i64, scratch_operands = 0 : i64, tpu.core_type = #tpu.core_type<tc>, window_params = [{transform_indices = @transform_0, window_bounds = array<i64: 8, 8, 32>}, {transform_indices = @transform_1, window_bounds = array<i64: 8, 1, 1>}, {transform_indices = @transform_2, window_bounds = array<i64: 8, 1, 1>}, {transform_indices = @transform_3, window_bounds = array<i64: 8, 1, 1>}, {transform_indices = @transform_4, window_bounds = array<i64: 8, 1, 1>}, {pipeline_mode = #tpu.pipeline_mode<synchronous>, transform_indices = @transform_5, window_bounds = array<i64: 32, 128>}, {pipeline_mode = #tpu.pipeline_mode<synchronous>, transform_indices = @transform_6, window_bounds = array<i64: 1, 128>}, {pipeline_mode = #tpu.pipeline_mode<synchronous>, transform_indices = @transform_7, window_bounds = array<i64: 128, 32>}, {pipeline_mode = #tpu.pipeline_mode<synchronous>, transform_indices = @transform_8, window_bounds = array<i64: 1, 32>}, {transform_indices = @transform_9, window_bounds = array<i64: 8, 8, 32>}, {transform_indices = @transform_10, window_bounds = array<i64: 8, 1, 1>}, {transform_indices = @transform_11, window_bounds = array<i64: 8, 1, 1>}]} {
    %c0 = arith.constant 0 : index
    %c0_0 = arith.constant 0 : index
    %c0_1 = arith.constant 0 : index
    %0 = vector.load %arg1[%c0, %c0_0, %c0_1] : memref<8x8x32xf32, #tpu.memory_space<vmem>>, vector<8x8x32xf32>
    %c0_2 = arith.constant 0 : index
    %c0_3 = arith.constant 0 : index
    %c0_4 = arith.constant 0 : index
    %1 = vector.load %arg2[%c0_2, %c0_3, %c0_4] : memref<8x1x1xf32, #tpu.memory_space<vmem>>, vector<8x1x1xf32>
    %2 = vector.broadcast %1 : vector<8x1x1xf32> to vector<8x8x32xf32>
    %3 = arith.mulf %2, %0 : vector<8x8x32xf32>
    %c0_5 = arith.constant 0 : index
    %c0_6 = arith.constant 0 : index
    %c0_7 = arith.constant 0 : index
    %4 = vector.load %arg3[%c0_5, %c0_6, %c0_7] : memref<8x1x1xf32, #tpu.memory_space<vmem>>, vector<8x1x1xf32>
    %5 = vector.broadcast %4 : vector<8x1x1xf32> to vector<8x8x32xf32>
    %6 = arith.addf %3, %5 : vector<8x8x32xf32>
    %c0_8 = arith.constant 0 : index
    %c0_9 = arith.constant 0 : index
    %c0_10 = arith.constant 0 : index
    %7 = vector.load %arg4[%c0_8, %c0_9, %c0_10] : memref<8x1x1xf32, #tpu.memory_space<vmem>>, vector<8x1x1xf32>
    %8 = vector.broadcast %7 : vector<8x1x1xf32> to vector<8x8x32xf32>
    %9 = arith.mulf %8, %0 : vector<8x8x32xf32>
    %c0_11 = arith.constant 0 : index
    %c0_12 = arith.constant 0 : index
    %c0_13 = arith.constant 0 : index
    %10 = vector.load %arg5[%c0_11, %c0_12, %c0_13] : memref<8x1x1xf32, #tpu.memory_space<vmem>>, vector<8x1x1xf32>
    %11 = vector.broadcast %10 : vector<8x1x1xf32> to vector<8x8x32xf32>
    %12 = arith.addf %9, %11 : vector<8x8x32xf32>
    %13 = vector.shape_cast %12 : vector<8x8x32xf32> to vector<64x32xf32>
    %c0_14 = arith.constant 0 : index
    %c0_15 = arith.constant 0 : index
    %14 = vector.load %arg6[%c0_14, %c0_15] : memref<32x128xf32, #tpu.memory_space<vmem>>, vector<32x128xf32>
    %cst = arith.constant dense<0.000000e+00> : vector<64x128xf32>
    %15 = tpu.matmul %13, %14, %cst {dimension_numbers = #tpu.dot_dimension_numbers<[1], [0], [0], [1], [0, 0, 1, 1], [], []>} : vector<64x32xf32>, vector<32x128xf32>, vector<64x128xf32> -> vector<64x128xf32>
    %c0_16 = arith.constant 0 : index
    %c0_17 = arith.constant 0 : index
    %16 = vector.load %arg7[%c0_16, %c0_17] : memref<1x128xf32, #tpu.memory_space<vmem>>, vector<1x128xf32>
    %17 = vector.broadcast %16 : vector<1x128xf32> to vector<64x128xf32>
    %18 = arith.addf %15, %17 : vector<64x128xf32>
    %cst_18 = arith.constant 5.000000e-01 : f32
    %19 = vector.broadcast %cst_18 : f32 to vector<64x128xf32>
    %20 = arith.mulf %19, %18 : vector<64x128xf32>
    %cst_19 = arith.constant 4.471500e-02 : f32
    %21 = vector.broadcast %cst_19 : f32 to vector<64x128xf32>
    %22 = arith.mulf %21, %18 : vector<64x128xf32>
    %23 = arith.mulf %22, %18 : vector<64x128xf32>
    %24 = arith.mulf %23, %18 : vector<64x128xf32>
    %25 = arith.addf %18, %24 : vector<64x128xf32>
    %cst_20 = arith.constant 0.797884583 : f32
    %26 = vector.broadcast %cst_20 : f32 to vector<64x128xf32>
    %27 = arith.mulf %26, %25 : vector<64x128xf32>
    %28 = math.tanh %27 : vector<64x128xf32>
    %cst_21 = arith.constant 1.000000e+00 : f32
    %29 = vector.broadcast %cst_21 : f32 to vector<64x128xf32>
    %30 = arith.addf %29, %28 : vector<64x128xf32>
    %31 = arith.mulf %20, %30 : vector<64x128xf32>
    %c0_22 = arith.constant 0 : index
    %c0_23 = arith.constant 0 : index
    %32 = vector.load %arg8[%c0_22, %c0_23] : memref<128x32xf32, #tpu.memory_space<vmem>>, vector<128x32xf32>
    %cst_24 = arith.constant dense<0.000000e+00> : vector<64x32xf32>
    %33 = tpu.matmul %31, %32, %cst_24 {dimension_numbers = #tpu.dot_dimension_numbers<[1], [0], [0], [1], [0, 0, 1, 1], [], []>} : vector<64x128xf32>, vector<128x32xf32>, vector<64x32xf32> -> vector<64x32xf32>
    %c0_25 = arith.constant 0 : index
    %c0_26 = arith.constant 0 : index
    %34 = vector.load %arg9[%c0_25, %c0_26] : memref<1x32xf32, #tpu.memory_space<vmem>>, vector<1x32xf32>
    %35 = vector.broadcast %34 : vector<1x32xf32> to vector<64x32xf32>
    %36 = arith.addf %33, %35 : vector<64x32xf32>
    %37 = vector.shape_cast %36 : vector<64x32xf32> to vector<8x8x32xf32>
    %38 = arith.addf %6, %37 : vector<8x8x32xf32>
    %c0_27 = arith.constant 0 : index
    %c0_28 = arith.constant 0 : index
    %c0_29 = arith.constant 0 : index
    %39 = vector.load %arg10[%c0_27, %c0_28, %c0_29] : memref<8x8x32xf32, #tpu.memory_space<vmem>>, vector<8x8x32xf32>
    tpu.vector_store %arg10[%c0_27, %c0_28, %c0_29], %38 {strides = array<i32>} : memref<8x8x32xf32, #tpu.memory_space<vmem>>, vector<8x8x32xf32>,
    %cst_30 = arith.constant dense<0.000000e+00> : vector<8x8xf32>
    %40 = vector.multi_reduction <add>, %38, %cst_30 [2] : vector<8x8x32xf32> to vector<8x8xf32>
    %cst_31 = arith.constant dense<0.000000e+00> : vector<8xf32>
    %41 = vector.multi_reduction <add>, %40, %cst_31 [1] : vector<8x8xf32> to vector<8xf32>
    %42 = vector.shape_cast %41 : vector<8xf32> to vector<8x1xf32>
    %43 = arith.mulf %38, %38 : vector<8x8x32xf32>
    %cst_32 = arith.constant dense<0.000000e+00> : vector<8x8xf32>
    %44 = vector.multi_reduction <add>, %43, %cst_32 [2] : vector<8x8x32xf32> to vector<8x8xf32>
    %cst_33 = arith.constant dense<0.000000e+00> : vector<8xf32>
    %45 = vector.multi_reduction <add>, %44, %cst_33 [1] : vector<8x8xf32> to vector<8xf32>
    %46 = vector.shape_cast %45 : vector<8xf32> to vector<8x1xf32>
    %47 = vector.shape_cast %42 : vector<8x1xf32> to vector<8x1x1xf32>
    %c0_34 = arith.constant 0 : index
    %c0_35 = arith.constant 0 : index
    %c0_36 = arith.constant 0 : index
    %48 = vector.load %arg11[%c0_34, %c0_35, %c0_36] : memref<8x1x1xf32, #tpu.memory_space<vmem>>, vector<8x1x1xf32>
    tpu.vector_store %arg11[%c0_34, %c0_35, %c0_36], %47 {strides = array<i32>} : memref<8x1x1xf32, #tpu.memory_space<vmem>>, vector<8x1x1xf32>,
    %49 = vector.shape_cast %46 : vector<8x1xf32> to vector<8x1x1xf32>
    %c0_37 = arith.constant 0 : index
    %c0_38 = arith.constant 0 : index
    %c0_39 = arith.constant 0 : index
    %50 = vector.load %arg12[%c0_37, %c0_38, %c0_39] : memref<8x1x1xf32, #tpu.memory_space<vmem>>, vector<8x1x1xf32>
    tpu.vector_store %arg12[%c0_37, %c0_38, %c0_39], %49 {strides = array<i32>} : memref<8x1x1xf32, #tpu.memory_space<vmem>>, vector<8x1x1xf32>,
    return
  }
  func.func @transform_0(%arg0: i32) -> (i32, i32, i32) {
    %c0_i32 = arith.constant 0 : i32
    %c0_i32_0 = arith.constant 0 : i32
    %c0_i32_1 = arith.constant 0 : i32
    return %arg0, %c0_i32, %c0_i32_0 : i32, i32, i32
  }
  func.func @transform_1(%arg0: i32) -> (i32, i32, i32) {
    %c0_i32 = arith.constant 0 : i32
    %c0_i32_0 = arith.constant 0 : i32
    %c0_i32_1 = arith.constant 0 : i32
    return %arg0, %c0_i32, %c0_i32_0 : i32, i32, i32
  }
  func.func @transform_2(%arg0: i32) -> (i32, i32, i32) {
    %c0_i32 = arith.constant 0 : i32
    %c0_i32_0 = arith.constant 0 : i32
    %c0_i32_1 = arith.constant 0 : i32
    return %arg0, %c0_i32, %c0_i32_0 : i32, i32, i32
  }
  func.func @transform_3(%arg0: i32) -> (i32, i32, i32) {
    %c0_i32 = arith.constant 0 : i32
    %c0_i32_0 = arith.constant 0 : i32
    %c0_i32_1 = arith.constant 0 : i32
    return %arg0, %c0_i32, %c0_i32_0 : i32, i32, i32
  }
  func.func @transform_4(%arg0: i32) -> (i32, i32, i32) {
    %c0_i32 = arith.constant 0 : i32
    %c0_i32_0 = arith.constant 0 : i32
    %c0_i32_1 = arith.constant 0 : i32
    return %arg0, %c0_i32, %c0_i32_0 : i32, i32, i32
  }
  func.func @transform_5(%arg0: i32) -> (i32, i32) {
    %c0_i32 = arith.constant 0 : i32
    %c0_i32_0 = arith.constant 0 : i32
    %c0_i32_1 = arith.constant 0 : i32
    return %c0_i32, %c0_i32_0 : i32, i32
  }
  func.func @transform_6(%arg0: i32) -> (i32, i32) {
    %c0_i32 = arith.constant 0 : i32
    %c0_i32_0 = arith.constant 0 : i32
    %c0_i32_1 = arith.constant 0 : i32
    return %c0_i32, %c0_i32_0 : i32, i32
  }
  func.func @transform_7(%arg0: i32) -> (i32, i32) {
    %c0_i32 = arith.constant 0 : i32
    %c0_i32_0 = arith.constant 0 : i32
    %c0_i32_1 = arith.constant 0 : i32
    return %c0_i32, %c0_i32_0 : i32, i32
  }
  func.func @transform_8(%arg0: i32) -> (i32, i32) {
    %c0_i32 = arith.constant 0 : i32
    %c0_i32_0 = arith.constant 0 : i32
    %c0_i32_1 = arith.constant 0 : i32
    return %c0_i32, %c0_i32_0 : i32, i32
  }
  func.func @transform_9(%arg0: i32) -> (i32, i32, i32) {
    %c0_i32 = arith.constant 0 : i32
    %c0_i32_0 = arith.constant 0 : i32
    %c0_i32_1 = arith.constant 0 : i32
    return %arg0, %c0_i32, %c0_i32_0 : i32, i32, i32
  }
  func.func @transform_10(%arg0: i32) -> (i32, i32, i32) {
    %c0_i32 = arith.constant 0 : i32
    %c0_i32_0 = arith.constant 0 : i32
    %c0_i32_1 = arith.constant 0 : i32
    return %arg0, %c0_i32, %c0_i32_0 : i32, i32, i32
  }
  func.func @transform_11(%arg0: i32) -> (i32, i32, i32) {
    %c0_i32 = arith.constant 0 : i32
    %c0_i32_0 = arith.constant 0 : i32
    %c0_i32_1 = arith.constant 0 : i32
    return %arg0, %c0_i32, %c0_i32_0 : i32, i32, i32
  }
}

module attributes {stable_mosaic.version = 11 : i64} {
  func.func @affine_kernel(%arg0: i32, %arg1: memref<8x8x32xf32, #tpu.memory_space<vmem>>, %arg2: memref<8x1x1xf32, #tpu.memory_space<vmem>>, %arg3: memref<8x1x1xf32, #tpu.memory_space<vmem>>, %arg4: memref<8x8x32xf32, #tpu.memory_space<vmem>>) attributes {dimension_semantics = [#tpu.dimension_semantics<parallel>], iteration_bounds = array<i64: 1>, scalar_prefetch = 0 : i64, scratch_operands = 0 : i64, tpu.core_type = #tpu.core_type<tc>, window_params = [{transform_indices = @transform_0, window_bounds = array<i64: 8, 8, 32>}, {transform_indices = @transform_1, window_bounds = array<i64: 8, 1, 1>}, {transform_indices = @transform_2, window_bounds = array<i64: 8, 1, 1>}, {transform_indices = @transform_3, window_bounds = array<i64: 8, 8, 32>}]} {
    %c0 = arith.constant 0 : index
    %c0_0 = arith.constant 0 : index
    %c0_1 = arith.constant 0 : index
    %0 = vector.load %arg2[%c0, %c0_0, %c0_1] : memref<8x1x1xf32, #tpu.memory_space<vmem>>, vector<8x1x1xf32>
    %c0_2 = arith.constant 0 : index
    %c0_3 = arith.constant 0 : index
    %c0_4 = arith.constant 0 : index
    %1 = vector.load %arg1[%c0_2, %c0_3, %c0_4] : memref<8x8x32xf32, #tpu.memory_space<vmem>>, vector<8x8x32xf32>
    %2 = vector.broadcast %0 : vector<8x1x1xf32> to vector<8x8x32xf32>
    %3 = arith.mulf %2, %1 : vector<8x8x32xf32>
    %c0_5 = arith.constant 0 : index
    %c0_6 = arith.constant 0 : index
    %c0_7 = arith.constant 0 : index
    %4 = vector.load %arg3[%c0_5, %c0_6, %c0_7] : memref<8x1x1xf32, #tpu.memory_space<vmem>>, vector<8x1x1xf32>
    %5 = vector.broadcast %4 : vector<8x1x1xf32> to vector<8x8x32xf32>
    %6 = arith.addf %3, %5 : vector<8x8x32xf32>
    %c0_8 = arith.constant 0 : index
    %c0_9 = arith.constant 0 : index
    %c0_10 = arith.constant 0 : index
    %7 = vector.load %arg4[%c0_8, %c0_9, %c0_10] : memref<8x8x32xf32, #tpu.memory_space<vmem>>, vector<8x8x32xf32>
    tpu.vector_store %arg4[%c0_8, %c0_9, %c0_10], %6 {strides = array<i32>} : memref<8x8x32xf32, #tpu.memory_space<vmem>>, vector<8x8x32xf32>,
    return
  }
  func.func @transform_0(%arg0: i32) -> (i32, i32, i32) {
    %c0_i32 = arith.constant 0 : i32
    %c0_i32_0 = arith.constant 0 : i32
    %c0_i32_1 = arith.constant 0 : i32
    return %arg0, %c0_i32, %c0_i32_0 : i32, i32, i32
  }
  func.func @transform_1(%arg0: i32) -> (i32, i32, i32) {
    %c0_i32 = arith.constant 0 : i32
    %c0_i32_0 = arith.constant 0 : i32
    %c0_i32_1 = arith.constant 0 : i32
    return %arg0, %c0_i32, %c0_i32_0 : i32, i32, i32
  }
  func.func @transform_2(%arg0: i32) -> (i32, i32, i32) {
    %c0_i32 = arith.constant 0 : i32
    %c0_i32_0 = arith.constant 0 : i32
    %c0_i32_1 = arith.constant 0 : i32
    return %arg0, %c0_i32, %c0_i32_0 : i32, i32, i32
  }
  func.func @transform_3(%arg0: i32) -> (i32, i32, i32) {
    %c0_i32 = arith.constant 0 : i32
    %c0_i32_0 = arith.constant 0 : i32
    %c0_i32_1 = arith.constant 0 : i32
    return %arg0, %c0_i32, %c0_i32_0 : i32, i32, i32
  }
}

</mosaic_0001>

<llo_original>
// kernel: tile.93
$region0: #{tile.93}
  #allocation0 [shape = 's32[1]{0}', space=sflag, size = 0x4, scoped, tag = 'scoped memory for tile.93']
  %s0 = inlined_call_operand.vmem [shape: f32[4], index: 0, kind: input, shape index: {}]
  %s1 = inlined_call_operand.vmem [shape: f32[2,4], index: 1, kind: output, shape index: {}]
  // Predicated region
  $region2: #{tile.93} parent=0 // pred_check
    _
  $region3: #{tile.93} parent=0 // pred_check_branch
    %3 = sbr.rel (0) target = $region5
  $region4: #{tile.93} parent=0 // pred_region
    _
  $region5: #{tile.93} parent=0 // pred_fallthru
    _
  %v4 = vld [vmem:[%s0] ss:$0 sm:$0xff]
  %5 = vst [vmem:[%s1] sm:$0x3] %v4

// kernel: tile.0
$region0: #{tile.0}
  %s0 = inlined_call_operand.vmem [shape: f32[2,4], index: 0, kind: input, shape index: {}]
  %s1 = inlined_call_operand.vmem [shape: f32[8,1,1], index: 1, kind: output, shape index: {}]
  $region1: #{tile.0} parent=0
    #allocation0 [shape = 'u8[32768]{0}', space=vmem, size = 0x8000, scoped, tag = 'scoped mem for output reshape']
    #allocation1 [shape = 'u8[4096]{0}', space=vmem, size = 0x1000, scoped, tag = 'scoped mem for input reshape']
    %s3 = ssub.s32 4, 1
    %v4 = vld [vmem:[%s0] sm:%s3]
    %5 = vst [vmem:[#allocation1] sm:%s3] %v4
    %v6 = vld [vmem:[#allocation1] sm:$0x3]
    %vm7 = vcmask 7168
    %8 = vst.msk [vmem:[#allocation0] sm:$0x1] %vm7, %v6
    %s9 = scalar_lea.vmem [#allocation0], 31
    %10 = vst.msk [vmem:[%s9] sm:$0x2] %vm7, %v6
    %v11 = vld [vmem:[#allocation1] sm:$0x3]
    %12 = vrot.lane.b32.xlu0 %v11, 127
    %v13 = vpop.permute.xlu0 %12
    %vm14 = vcmask 7168
    %s15 = scalar_lea.vmem [#allocation0], 8
    %16 = vst.msk [vmem:[%s15] sm:$0x1] %vm14, %v13
    %s17 = scalar_lea.vmem [#allocation0], 39
    %18 = vst.msk [vmem:[%s17] sm:$0x2] %vm14, %v13
    %v19 = vld [vmem:[#allocation1] sm:$0x3]
    %20 = vrot.lane.b32.xlu0 %v19, 126
    %v21 = vpop.permute.xlu0 %20
    %vm22 = vcmask 7168
    %s23 = scalar_lea.vmem [#allocation0], 16
    %24 = vst.msk [vmem:[%s23] sm:$0x1] %vm22, %v21
    %s25 = scalar_lea.vmem [#allocation0], 47
    %26 = vst.msk [vmem:[%s25] sm:$0x2] %vm22, %v21
    %v27 = vld [vmem:[#allocation1] sm:$0x3]
    %28 = vrot.lane.b32.xlu0 %v27, 125
    %v29 = vpop.permute.xlu0 %28
    %vm30 = vcmask 7168
    %s31 = scalar_lea.vmem [#allocation0], 24
    %32 = vst.msk [vmem:[%s31] sm:$0x1] %vm30, %v29
    %s33 = scalar_lea.vmem [#allocation0], 55
    %34 = vst.msk [vmem:[%s33] sm:$0x2] %vm30, %v29
    %s36 = ssub.s32 2, 1
    %v37 = vld [vmem:[#allocation0] sm:%s36]
    %s39 = ssub.s32 2, 1
    %40 = vst [vmem:[%s1] sm:%s39] %v37
    %s41 = scalar_lea.vmem [#allocation0], 8
    %v42 = vld [vmem:[%s41] sm:%s36]
    %s44 = ssub.s32 2, 1
    %s45 = scalar_lea.vmem %s1, 1
    %46 = vst [vmem:[%s45] sm:%s44] %v42
    %s47 = scalar_lea.vmem [#allocation0], 16
    %v48 = vld [vmem:[%s47] sm:%s36]
    %s50 = ssub.s32 2, 1
    %s51 = scalar_lea.vmem %s1, 2
    %52 = vst [vmem:[%s51] sm:%s50] %v48
    %s53 = scalar_lea.vmem [#allocation0], 24
    %v54 = vld [vmem:[%s53] sm:%s36]
    %s56 = ssub.s32 2, 1
    %s57 = scalar_lea.vmem %s1, 3
    %58 = vst [vmem:[%s57] sm:%s56] %v54
    %s59 = scalar_lea.vmem [#allocation0], 32
    %v60 = vld [vmem:[%s59] sm:%s36]
    %s62 = ssub.s32 2, 1
    %s63 = scalar_lea.vmem %s1, 4
    %64 = vst [vmem:[%s63] sm:%s62] %v60
    %s65 = scalar_lea.vmem [#allocation0], 40
    %v66 = vld [vmem:[%s65] sm:%s36]
    %s68 = ssub.s32 2, 1
    %s69 = scalar_lea.vmem %s1, 5
    %70 = vst [vmem:[%s69] sm:%s68] %v66
    %s71 = scalar_lea.vmem [#allocation0], 48
    %v72 = vld [vmem:[%s71] sm:%s36]
    %s74 = ssub.s32 2, 1
    %s75 = scalar_lea.vmem %s1, 6
    %76 = vst [vmem:[%s75] sm:%s74] %v72
    %s77 = scalar_lea.vmem [#allocation0], 56
    %v78 = vld [vmem:[%s77] sm:%s36]
    %s80 = ssub.s32 2, 1
    %s81 = scalar_lea.vmem %s1, 7
    %82 = vst [vmem:[%s81] sm:%s80] %v78

// kernel: encoder1_forward.6
$region0: #{encoder1_forward.6}
  #allocation0 [shape = 'u32[]', space=smem, size = 0x4, offset = 0x4, fixed_abs, tag = 'smem constant byte address 0x4 - core index']
  #allocation1 [shape = 'u32[72,128]{1,0:T(1,128)}', space=vmem, size = 0x9000, scoped, tag = 'internal scratch']
  %s0 = inlined_call_operand.hbm [shape: f32[8,8,32], index: 0, kind: input, shape index: {}]
  %s1 = inlined_call_operand.vmem [shape: f32[8,1,1], index: 1, kind: output, shape index: {0}]
  %s2 = inlined_call_operand.vmem [shape: f32[8,1,1], index: 2, kind: output, shape index: {1}]
  %3 = xla_tuple %s1, %s2
  %s4 = sld [smem:[#allocation0]]
  $region26: #{encoder1_forward.6} parent=0
    _
  %s6 = ssub.s32 1, %s4
  %s7 = scalar_select 0, %s6, %s4
  $region1: #{encoder1_forward.6} parent=0
    #allocation2 [shape = 'u8[32768]{0}', space=vmem, size = 0x8000, scoped, tag = 'input window, operand 0, single buffered']
    #allocation3 [shape = 's32[1]{0}', space=sflag, size = 0x4, scoped, tag = 'scoped memory for encoder1_forward.6']
    %8 = vsyncpa [#allocation3], 0
    // Predicated region
    $region2: #{encoder1_forward.6} parent=1 // pred_check
      _
    $region3: #{encoder1_forward.6} parent=1 // pred_check_branch
      %10 = sbr.rel (0) target = $region5
    $region4: #{encoder1_forward.6} parent=1 // pred_region
      %12 = vsyncadd [#allocation3], 0
      %s13 = sshll.u32 %s0, 4
      %s14 = int_to_ptr.hbm [resolvable:$true] %s13
      %s15 = sshll.u32 [#allocation2], 4
      %s16 = int_to_ptr.vmem [resolvable:$true] %s15
      %21 = dma.hbm_to_vmem [thread:$0]  %s14, 1024, %s16, [#allocation3], 128, 128, 8
    $region5: #{encoder1_forward.6} parent=1 // pred_fallthru
      _
    // Predicated region
    $region6: #{encoder1_forward.6} parent=1 // pred_check
      _
    $region7: #{encoder1_forward.6} parent=1 // pred_check_branch
      %23 = sbr.rel (0) target = $region9
    $region8: #{encoder1_forward.6} parent=1 // pred_region
      %25 = dma.done [#allocation3], 1024
    $region9: #{encoder1_forward.6} parent=1 // pred_fallthru
      _
    %v26 = vld [vmem:[#allocation2] sm:$0xff]
    %v27 = vld [vmem:[#allocation2 + $0x8] sm:$0xff]
    %v28 = vld [vmem:[#allocation2 + $0x10] sm:$0xff]
    %v29 = vld [vmem:[#allocation2 + $0x18] sm:$0xff]
    %v30 = vld [vmem:[#allocation2 + $0x20] sm:$0xff]
    %v31 = vld [vmem:[#allocation2 + $0x28] sm:$0xff]
    %v32 = vld [vmem:[#allocation2 + $0x30] sm:$0xff]
    %v33 = vld [vmem:[#allocation2 + $0x38] sm:$0xff]
    %vm34 = vcmask 261120
    %v35 = vsel %vm34, %v26, 0.0
    %36 = vadd.xlane.f32.xlu0 %v35
    %v37 = vpop.xlane.xlu0 %36
    %v38 = vsel %vm34, %v27, 0.0
    %39 = vadd.xlane.f32.xlu0 %v38
    %v40 = vpop.xlane.xlu0 %39
    %v41 = vsel %vm34, %v28, 0.0
    %42 = vadd.xlane.f32.xlu0 %v41
    %v43 = vpop.xlane.xlu0 %42
    %v44 = vsel %vm34, %v29, 0.0
    %45 = vadd.xlane.f32.xlu0 %v44
    %v46 = vpop.xlane.xlu0 %45
    %v47 = vsel %vm34, %v30, 0.0
    %48 = vadd.xlane.f32.xlu0 %v47
    %v49 = vpop.xlane.xlu0 %48
    %v50 = vsel %vm34, %v31, 0.0
    %51 = vadd.xlane.f32.xlu0 %v50
    %v52 = vpop.xlane.xlu0 %51
    %v53 = vsel %vm34, %v32, 0.0
    %54 = vadd.xlane.f32.xlu0 %v53
    %v55 = vpop.xlane.xlu0 %54
    %v56 = vsel %vm34, %v33, 0.0
    %57 = vadd.xlane.f32.xlu0 %v56
    %v58 = vpop.xlane.xlu0 %57
    %v67 = vlaneseq
    %v68 = vand.u32 %v67, 127
    %v69 = vperm.slane %v37, %v68
    %v70 = vperm.slane %v40, %v68
    %v71 = vperm.slane %v43, %v68
    %v72 = vperm.slane %v46, %v68
    %v73 = vperm.slane %v49, %v68
    %v74 = vperm.slane %v52, %v68
    %v75 = vperm.slane %v55, %v68
    %v76 = vperm.slane %v58, %v68
    %vm77 = vcmask 1041409
    %v78 = vsel %vm77, %v70, %v69
    %vm79 = vcmask 1042434
    %v80 = vsel %vm79, %v71, %v78
    %vm81 = vcmask 1043459
    %v82 = vsel %vm81, %v72, %v80
    %vm83 = vcmask 1044484
    %v84 = vsel %vm83, %v73, %v82
    %vm85 = vcmask 1045509
    %v86 = vsel %vm85, %v74, %v84
    %vm87 = vcmask 1046534
    %v88 = vsel %vm87, %v75, %v86
    %vm89 = vcmask 1047559
    %v90 = vsel %vm89, %v76, %v88
    %vm92 = vcmask 64512
    %v93 = vsel %vm92, %v90, 0.0
    %94 = vadd.xlane.f32.xlu0 %v93
    %v95 = vpop.xlane.xlu0 %94
    %v96 = vmul.f32 %v26, %v26
    %v97 = vmul.f32 %v27, %v27
    %v98 = vmul.f32 %v28, %v28
    %v99 = vmul.f32 %v29, %v29
    %v100 = vmul.f32 %v30, %v30
    %v101 = vmul.f32 %v31, %v31
    %v102 = vmul.f32 %v32, %v32
    %v103 = vmul.f32 %v33, %v33
    %v104 = vsel %vm34, %v96, 0.0
    %105 = vadd.xlane.f32.xlu0 %v104
    %v106 = vpop.xlane.xlu0 %105
    %v107 = vsel %vm34, %v97, 0.0
    %108 = vadd.xlane.f32.xlu0 %v107
    %v109 = vpop.xlane.xlu0 %108
    %v110 = vsel %vm34, %v98, 0.0
    %111 = vadd.xlane.f32.xlu0 %v110
    %v112 = vpop.xlane.xlu0 %111
    %v113 = vsel %vm34, %v99, 0.0
    %114 = vadd.xlane.f32.xlu0 %v113
    %v115 = vpop.xlane.xlu0 %114
    %v116 = vsel %vm34, %v100, 0.0
    %117 = vadd.xlane.f32.xlu0 %v116
    %v118 = vpop.xlane.xlu0 %117
    %v119 = vsel %vm34, %v101, 0.0
    %120 = vadd.xlane.f32.xlu0 %v119
    %v121 = vpop.xlane.xlu0 %120
    %v122 = vsel %vm34, %v102, 0.0
    %123 = vadd.xlane.f32.xlu0 %v122
    %v124 = vpop.xlane.xlu0 %123
    %v125 = vsel %vm34, %v103, 0.0
    %126 = vadd.xlane.f32.xlu0 %v125
    %v127 = vpop.xlane.xlu0 %126
    %v136 = vperm.slane %v106, %v68
    %v137 = vperm.slane %v109, %v68
    %v138 = vperm.slane %v112, %v68
    %v139 = vperm.slane %v115, %v68
    %v140 = vperm.slane %v118, %v68
    %v141 = vperm.slane %v121, %v68
    %v142 = vperm.slane %v124, %v68
    %v143 = vperm.slane %v127, %v68
    %v144 = vsel %vm77, %v137, %v136
    %v145 = vsel %vm79, %v138, %v144
    %v146 = vsel %vm81, %v139, %v145
    %v147 = vsel %vm83, %v140, %v146
    %v148 = vsel %vm85, %v141, %v147
    %v149 = vsel %vm87, %v142, %v148
    %v150 = vsel %vm89, %v143, %v149
    %v152 = vsel %vm92, %v150, 0.0
    %153 = vadd.xlane.f32.xlu0 %v152
    %v154 = vpop.xlane.xlu0 %153
    %v156 = vperm.slane %v95, 0
    %v157 = vperm.slane %v95, 1
    %v158 = vperm.slane %v95, 2
    %v159 = vperm.slane %v95, 3
    %v160 = vperm.slane %v95, 4
    %v161 = vperm.slane %v95, 5
    %v162 = vperm.slane %v95, 6
    %v163 = vperm.slane %v95, 7
    %vm172 = vcmask 0
    %173 = vst.msk [vmem:[%s1] sm:$0x1] %vm172, %v156
    %174 = vst.msk [vmem:[%s1 + $0x1] sm:$0x1] %vm172, %v157
    %175 = vst.msk [vmem:[%s1 + $0x2] sm:$0x1] %vm172, %v158
    %176 = vst.msk [vmem:[%s1 + $0x3] sm:$0x1] %vm172, %v159
    %177 = vst.msk [vmem:[%s1 + $0x4] sm:$0x1] %vm172, %v160
    %178 = vst.msk [vmem:[%s1 + $0x5] sm:$0x1] %vm172, %v161
    %179 = vst.msk [vmem:[%s1 + $0x6] sm:$0x1] %vm172, %v162
    %180 = vst.msk [vmem:[%s1 + $0x7] sm:$0x1] %vm172, %v163
    %v182 = vperm.slane %v154, 0
    %v183 = vperm.slane %v154, 1
    %v184 = vperm.slane %v154, 2
    %v185 = vperm.slane %v154, 3
    %v186 = vperm.slane %v154, 4
    %v187 = vperm.slane %v154, 5
    %v188 = vperm.slane %v154, 6
    %v189 = vperm.slane %v154, 7
    %198 = vst.msk [vmem:[%s2] sm:$0x1] %vm172, %v182
    %199 = vst.msk [vmem:[%s2 + $0x1] sm:$0x1] %vm172, %v183
    %200 = vst.msk [vmem:[%s2 + $0x2] sm:$0x1] %vm172, %v184
    %201 = vst.msk [vmem:[%s2 + $0x3] sm:$0x1] %vm172, %v185
    %202 = vst.msk [vmem:[%s2 + $0x4] sm:$0x1] %vm172, %v186
    %203 = vst.msk [vmem:[%s2 + $0x5] sm:$0x1] %vm172, %v187
    %204 = vst.msk [vmem:[%s2 + $0x6] sm:$0x1] %vm172, %v188
    %205 = vst.msk [vmem:[%s2 + $0x7] sm:$0x1] %vm172, %v189
    // Predicated region
    $region10: #{encoder1_forward.6} parent=1 // pred_check
      _
    $region11: #{encoder1_forward.6} parent=1 // pred_check_branch
      %207 = sbr.rel (0) target = $region13
    $region12: #{encoder1_forward.6} parent=1 // pred_region
      _
    $region13: #{encoder1_forward.6} parent=1 // pred_fallthru
      _
    // Predicated region
    $region14: #{encoder1_forward.6} parent=1 // pred_check
      _
    $region15: #{encoder1_forward.6} parent=1 // pred_check_branch
      %209 = sbr.rel (0) target = $region17
    $region16: #{encoder1_forward.6} parent=1 // pred_region
      _
    $region17: #{encoder1_forward.6} parent=1 // pred_fallthru
      _
    // Predicated region
    $region18: #{encoder1_forward.6} parent=1 // pred_check
      _
    $region19: #{encoder1_forward.6} parent=1 // pred_check_branch
      %211 = sbr.rel (0) target = $region21
    $region20: #{encoder1_forward.6} parent=1 // pred_region
      _
    $region21: #{encoder1_forward.6} parent=1 // pred_fallthru
      _
    // Predicated region
    $region22: #{encoder1_forward.6} parent=1 // pred_check
      _
    $region23: #{encoder1_forward.6} parent=1 // pred_check_branch
      %213 = sbr.rel (0) target = $region25
    $region24: #{encoder1_forward.6} parent=1 // pred_region
      _
    $region25: #{encoder1_forward.6} parent=1 // pred_fallthru
      _
    %214 = vsyncpa [#allocation3], 1

// kernel: encoder1_forward.11
$region0: #{encoder1_forward.11}
  #allocation0 [shape = 'u32[]', space=smem, size = 0x4, offset = 0x4, fixed_abs, tag = 'smem constant byte address 0x4 - core index']
  #allocation1 [shape = 'u32[72,128]{1,0:T(1,128)}', space=vmem, size = 0x9000, scoped, tag = 'internal scratch']
  %s0 = inlined_call_operand.vmem [shape: f32[8,8,32], index: 0, kind: input, shape index: {}]
  %s1 = inlined_call_operand.vmem [shape: f32[8,1,1], index: 1, kind: input, shape index: {}]
  %s2 = inlined_call_operand.vmem [shape: f32[8,1,1], index: 2, kind: input, shape index: {}]
  %s3 = inlined_call_operand.hbm [shape: f32[8,8,32], index: 3, kind: output, shape index: {}]
  %s4 = sld [smem:[#allocation0]]
  $region22: #{encoder1_forward.11} parent=0
    _
  %s6 = ssub.s32 1, %s4
  %s7 = scalar_select 0, %s6, %s4
  $region1: #{encoder1_forward.11} parent=0
    #allocation2 [shape = 'u8[32768]{0}', space=vmem, size = 0x8000, scoped, tag = 'output window, operand 0, single buffered']
    #allocation3 [shape = 's32[1]{0}', space=sflag, size = 0x4, scoped, tag = 'scoped memory for encoder1_forward.11']
    %8 = vsyncpa [#allocation3], 0
    // Predicated region
    $region2: #{encoder1_forward.11} parent=1 // pred_check
      _
    $region3: #{encoder1_forward.11} parent=1 // pred_check_branch
      %10 = sbr.rel (0) target = $region5
    $region4: #{encoder1_forward.11} parent=1 // pred_region
      _
    $region5: #{encoder1_forward.11} parent=1 // pred_fallthru
      _
    // Predicated region
    $region6: #{encoder1_forward.11} parent=1 // pred_check
      _
    $region7: #{encoder1_forward.11} parent=1 // pred_check_branch
      %12 = sbr.rel (0) target = $region9
    $region8: #{encoder1_forward.11} parent=1 // pred_region
      _
    $region9: #{encoder1_forward.11} parent=1 // pred_fallthru
      _
    // Predicated region
    $region10: #{encoder1_forward.11} parent=1 // pred_check
      _
    $region11: #{encoder1_forward.11} parent=1 // pred_check_branch
      %14 = sbr.rel (0) target = $region13
    $region12: #{encoder1_forward.11} parent=1 // pred_region
      _
    $region13: #{encoder1_forward.11} parent=1 // pred_fallthru
      _
    %v15 = vld [vmem:[%s1] sm:$0x1]
    %v16 = vld [vmem:[%s1 + $0x1] sm:$0x1]
    %v17 = vld [vmem:[%s1 + $0x2] sm:$0x1]
    %v18 = vld [vmem:[%s1 + $0x3] sm:$0x1]
    %v19 = vld [vmem:[%s1 + $0x4] sm:$0x1]
    %v20 = vld [vmem:[%s1 + $0x5] sm:$0x1]
    %v21 = vld [vmem:[%s1 + $0x6] sm:$0x1]
    %v22 = vld [vmem:[%s1 + $0x7] sm:$0x1]
    %v23 = vld [vmem:[%s0] sm:$0xff]
    %v24 = vld [vmem:[%s0 + $0x8] sm:$0xff]
    %v25 = vld [vmem:[%s0 + $0x10] sm:$0xff]
    %v26 = vld [vmem:[%s0 + $0x18] sm:$0xff]
    %v27 = vld [vmem:[%s0 + $0x20] sm:$0xff]
    %v28 = vld [vmem:[%s0 + $0x28] sm:$0xff]
    %v29 = vld [vmem:[%s0 + $0x30] sm:$0xff]
    %v30 = vld [vmem:[%s0 + $0x38] sm:$0xff]
    %v39 = vperm.slane %v15, 0
    %v40 = vperm.slane %v16, 0
    %v41 = vperm.slane %v17, 0
    %v42 = vperm.slane %v18, 0
    %v43 = vperm.slane %v19, 0
    %v44 = vperm.slane %v20, 0
    %v45 = vperm.slane %v21, 0
    %v46 = vperm.slane %v22, 0
    %47 = vset.pattern.permute.xlu0 0
    %48 = vperm.xlu0 %47, %v39
    %v49 = vpop.permute.xlu0 %48
    %51 = vset.pattern.permute.xlu0 0
    %52 = vperm.xlu0 %51, %v40
    %v53 = vpop.permute.xlu0 %52
    %55 = vset.pattern.permute.xlu0 0
    %56 = vperm.xlu0 %55, %v41
    %v57 = vpop.permute.xlu0 %56
    %59 = vset.pattern.permute.xlu0 0
    %60 = vperm.xlu0 %59, %v42
    %v61 = vpop.permute.xlu0 %60
    %63 = vset.pattern.permute.xlu0 0
    %64 = vperm.xlu0 %63, %v43
    %v65 = vpop.permute.xlu0 %64
    %67 = vset.pattern.permute.xlu0 0
    %68 = vperm.xlu0 %67, %v44
    %v69 = vpop.permute.xlu0 %68
    %71 = vset.pattern.permute.xlu0 0
    %72 = vperm.xlu0 %71, %v45
    %v73 = vpop.permute.xlu0 %72
    %75 = vset.pattern.permute.xlu0 0
    %76 = vperm.xlu0 %75, %v46
    %v77 = vpop.permute.xlu0 %76
    %v79 = vmul.f32 %v49, %v23
    %v80 = vmul.f32 %v53, %v24
    %v81 = vmul.f32 %v57, %v25
    %v82 = vmul.f32 %v61, %v26
    %v83 = vmul.f32 %v65, %v27
    %v84 = vmul.f32 %v69, %v28
    %v85 = vmul.f32 %v73, %v29
    %v86 = vmul.f32 %v77, %v30
    %v87 = vld [vmem:[%s2] sm:$0x1]
    %v88 = vld [vmem:[%s2 + $0x1] sm:$0x1]
    %v89 = vld [vmem:[%s2 + $0x2] sm:$0x1]
    %v90 = vld [vmem:[%s2 + $0x3] sm:$0x1]
    %v91 = vld [vmem:[%s2 + $0x4] sm:$0x1]
    %v92 = vld [vmem:[%s2 + $0x5] sm:$0x1]
    %v93 = vld [vmem:[%s2 + $0x6] sm:$0x1]
    %v94 = vld [vmem:[%s2 + $0x7] sm:$0x1]
    %v103 = vperm.slane %v87, 0
    %v104 = vperm.slane %v88, 0
    %v105 = vperm.slane %v89, 0
    %v106 = vperm.slane %v90, 0
    %v107 = vperm.slane %v91, 0
    %v108 = vperm.slane %v92, 0
    %v109 = vperm.slane %v93, 0
    %v110 = vperm.slane %v94, 0
    %111 = vset.pattern.permute.xlu0 0
    %112 = vperm.xlu0 %111, %v103
    %v113 = vpop.permute.xlu0 %112
    %115 = vset.pattern.permute.xlu0 0
    %116 = vperm.xlu0 %115, %v104
    %v117 = vpop.permute.xlu0 %116
    %119 = vset.pattern.permute.xlu0 0
    %120 = vperm.xlu0 %119, %v105
    %v121 = vpop.permute.xlu0 %120
    %123 = vset.pattern.permute.xlu0 0
    %124 = vperm.xlu0 %123, %v106
    %v125 = vpop.permute.xlu0 %124
    %127 = vset.pattern.permute.xlu0 0
    %128 = vperm.xlu0 %127, %v107
    %v129 = vpop.permute.xlu0 %128
    %131 = vset.pattern.permute.xlu0 0
    %132 = vperm.xlu0 %131, %v108
    %v133 = vpop.permute.xlu0 %132
    %135 = vset.pattern.permute.xlu0 0
    %136 = vperm.xlu0 %135, %v109
    %v137 = vpop.permute.xlu0 %136
    %139 = vset.pattern.permute.xlu0 0
    %140 = vperm.xlu0 %139, %v110
    %v141 = vpop.permute.xlu0 %140
    %v143 = vadd.f32 %v79, %v113
    %v144 = vadd.f32 %v80, %v117
    %v145 = vadd.f32 %v81, %v121
    %v146 = vadd.f32 %v82, %v125
    %v147 = vadd.f32 %v83, %v129
    %v148 = vadd.f32 %v84, %v133
    %v149 = vadd.f32 %v85, %v137
    %v150 = vadd.f32 %v86, %v141
    %vm151 = vcmask 261120
    %152 = vst.msk [vmem:[#allocation2] sm:$0xff] %vm151, %v143
    %153 = vst.msk [vmem:[#allocation2 + $0x8] sm:$0xff] %vm151, %v144
    %154 = vst.msk [vmem:[#allocation2 + $0x10] sm:$0xff] %vm151, %v145
    %155 = vst.msk [vmem:[#allocation2 + $0x18] sm:$0xff] %vm151, %v146
    %156 = vst.msk [vmem:[#allocation2 + $0x20] sm:$0xff] %vm151, %v147
    %157 = vst.msk [vmem:[#allocation2 + $0x28] sm:$0xff] %vm151, %v148
    %158 = vst.msk [vmem:[#allocation2 + $0x30] sm:$0xff] %vm151, %v149
    %159 = vst.msk [vmem:[#allocation2 + $0x38] sm:$0xff] %vm151, %v150
    // Predicated region
    $region14: #{encoder1_forward.11} parent=1 // pred_check
      _
    $region15: #{encoder1_forward.11} parent=1 // pred_check_branch
      %161 = sbr.rel (0) target = $region17
    $region16: #{encoder1_forward.11} parent=1 // pred_region
      %163 = vsyncadd [#allocation3], 0
      %s164 = sshll.u32 [#allocation2], 4
      %s165 = int_to_ptr.vmem [resolvable:$true] %s164
      %s166 = sshll.u32 %s3, 4
      %s167 = int_to_ptr.hbm [resolvable:$true] %s166
      %172 = dma.vmem_to_hbm [thread:$0]  %s165, 1024, %s167, [#allocation3], 128, 128, 8
    $region17: #{encoder1_forward.11} parent=1 // pred_fallthru
      _
    // Predicated region
    $region18: #{encoder1_forward.11} parent=1 // pred_check
      _
    $region19: #{encoder1_forward.11} parent=1 // pred_check_branch
      %174 = sbr.rel (0) target = $region21
    $region20: #{encoder1_forward.11} parent=1 // pred_region
      %176 = dma.done [#allocation3], 1024
    $region21: #{encoder1_forward.11} parent=1 // pred_fallthru
      _
    %177 = vsyncpa [#allocation3], 1

// kernel: encoder1_forward.7
$region0: #{encoder1_forward.7}
  #allocation0 [shape = 'u32[]', space=smem, size = 0x4, offset = 0x4, fixed_abs, tag = 'smem constant byte address 0x4 - core index']
  #allocation1 [shape = 'u32[72,128]{1,0:T(1,128)}', space=vmem, size = 0x9000, scoped, tag = 'internal scratch']
  %s0 = inlined_call_operand.vmem [shape: f32[8,8,32], index: 0, kind: input, shape index: {}]
  %s1 = inlined_call_operand.vmem [shape: f32[8,1,1], index: 1, kind: input, shape index: {}]
  %s2 = inlined_call_operand.vmem [shape: f32[8,1,1], index: 2, kind: input, shape index: {}]
  %s3 = inlined_call_operand.vmem [shape: f32[8,1,1], index: 3, kind: input, shape index: {}]
  %s4 = inlined_call_operand.vmem [shape: f32[8,1,1], index: 4, kind: input, shape index: {}]
  %s5 = inlined_call_operand.vmem [shape: f32[32,128], index: 5, kind: input, shape index: {}]
  %s6 = inlined_call_operand.vmem [shape: f32[1,128], index: 6, kind: input, shape index: {}]
  %s7 = inlined_call_operand.vmem [shape: f32[128,32], index: 7, kind: input, shape index: {}]
  %s8 = inlined_call_operand.vmem [shape: f32[1,32], index: 8, kind: input, shape index: {}]
  %s9 = inlined_call_operand.vmem [shape: f32[8,8,32], index: 9, kind: output, shape index: {0}]
  %s10 = inlined_call_operand.vmem [shape: f32[8,1,1], index: 10, kind: output, shape index: {1}]
  %s11 = inlined_call_operand.vmem [shape: f32[8,1,1], index: 11, kind: output, shape index: {2}]
  %12 = xla_tuple %s9, %s10, %s11
  %s13 = sld [smem:[#allocation0]]
  $region62: #{encoder1_forward.7} parent=0
    _
  %s15 = ssub.s32 1, %s13
  %s16 = scalar_select 0, %s15, %s13
  // Predicated region
  $region2: #{encoder1_forward.7} parent=0 // pred_check
    _
  $region3: #{encoder1_forward.7} parent=0 // pred_check_branch
    %18 = sbr.rel (0) target = $region5
  $region4: #{encoder1_forward.7} parent=0 // pred_region
    _
  $region5: #{encoder1_forward.7} parent=0 // pred_fallthru
    _
  // Predicated region
  $region6: #{encoder1_forward.7} parent=0 // pred_check
    _
  $region7: #{encoder1_forward.7} parent=0 // pred_check_branch
    %20 = sbr.rel (0) target = $region9
  $region8: #{encoder1_forward.7} parent=0 // pred_region
    _
  $region9: #{encoder1_forward.7} parent=0 // pred_fallthru
    _
  // Predicated region
  $region10: #{encoder1_forward.7} parent=0 // pred_check
    _
  $region11: #{encoder1_forward.7} parent=0 // pred_check_branch
    %22 = sbr.rel (0) target = $region13
  $region12: #{encoder1_forward.7} parent=0 // pred_region
    _
  $region13: #{encoder1_forward.7} parent=0 // pred_fallthru
    _
  // Predicated region
  $region14: #{encoder1_forward.7} parent=0 // pred_check
    _
  $region15: #{encoder1_forward.7} parent=0 // pred_check_branch
    %24 = sbr.rel (0) target = $region17
  $region16: #{encoder1_forward.7} parent=0 // pred_region
    _
  $region17: #{encoder1_forward.7} parent=0 // pred_fallthru
    _
  // Predicated region
  $region18: #{encoder1_forward.7} parent=0 // pred_check
    _
  $region19: #{encoder1_forward.7} parent=0 // pred_check_branch
    %26 = sbr.rel (0) target = $region21
  $region20: #{encoder1_forward.7} parent=0 // pred_region
    _
  $region21: #{encoder1_forward.7} parent=0 // pred_fallthru
    _
  // Predicated region
  $region22: #{encoder1_forward.7} parent=0 // pred_check
    _
  $region23: #{encoder1_forward.7} parent=0 // pred_check_branch
    %28 = sbr.rel (0) target = $region25
  $region24: #{encoder1_forward.7} parent=0 // pred_region
    _
  $region25: #{encoder1_forward.7} parent=0 // pred_fallthru
    _
  // Predicated region
  $region26: #{encoder1_forward.7} parent=0 // pred_check
    _
  $region27: #{encoder1_forward.7} parent=0 // pred_check_branch
    %30 = sbr.rel (0) target = $region29
  $region28: #{encoder1_forward.7} parent=0 // pred_region
    _
  $region29: #{encoder1_forward.7} parent=0 // pred_fallthru
    _
  // Predicated region
  $region30: #{encoder1_forward.7} parent=0 // pred_check
    _
  $region31: #{encoder1_forward.7} parent=0 // pred_check_branch
    %32 = sbr.rel (0) target = $region33
  $region32: #{encoder1_forward.7} parent=0 // pred_region
    _
  $region33: #{encoder1_forward.7} parent=0 // pred_fallthru
    _
  // Predicated region
  $region34: #{encoder1_forward.7} parent=0 // pred_check
    _
  $region35: #{encoder1_forward.7} parent=0 // pred_check_branch
    %34 = sbr.rel (0) target = $region37
  $region36: #{encoder1_forward.7} parent=0 // pred_region
    _
  $region37: #{encoder1_forward.7} parent=0 // pred_fallthru
    _
  %v35 = vld [vmem:[%s0] sm:$0xff]
  %v36 = vld [vmem:[%s0 + $0x8] sm:$0xff]
  %v37 = vld [vmem:[%s0 + $0x10] sm:$0xff]
  %v38 = vld [vmem:[%s0 + $0x18] sm:$0xff]
  %v39 = vld [vmem:[%s0 + $0x20] sm:$0xff]
  %v40 = vld [vmem:[%s0 + $0x28] sm:$0xff]
  %v41 = vld [vmem:[%s0 + $0x30] sm:$0xff]
  %v42 = vld [vmem:[%s0 + $0x38] sm:$0xff]
  %v43 = vld [vmem:[%s1] sm:$0x1]
  %v44 = vld [vmem:[%s1 + $0x1] sm:$0x1]
  %v45 = vld [vmem:[%s1 + $0x2] sm:$0x1]
  %v46 = vld [vmem:[%s1 + $0x3] sm:$0x1]
  %v47 = vld [vmem:[%s1 + $0x4] sm:$0x1]
  %v48 = vld [vmem:[%s1 + $0x5] sm:$0x1]
  %v49 = vld [vmem:[%s1 + $0x6] sm:$0x1]
  %v50 = vld [vmem:[%s1 + $0x7] sm:$0x1]
  %v59 = vperm.slane %v43, 0
  %v60 = vperm.slane %v44, 0
  %v61 = vperm.slane %v45, 0
  %v62 = vperm.slane %v46, 0
  %v63 = vperm.slane %v47, 0
  %v64 = vperm.slane %v48, 0
  %v65 = vperm.slane %v49, 0
  %v66 = vperm.slane %v50, 0
  %67 = vset.pattern.permute.xlu0 0
  %68 = vperm.xlu0 %67, %v59
  %v69 = vpop.permute.xlu0 %68
  %71 = vset.pattern.permute.xlu0 0
  %72 = vperm.xlu0 %71, %v60
  %v73 = vpop.permute.xlu0 %72
  %75 = vset.pattern.permute.xlu0 0
  %76 = vperm.xlu0 %75, %v61
  %v77 = vpop.permute.xlu0 %76
  %79 = vset.pattern.permute.xlu0 0
  %80 = vperm.xlu0 %79, %v62
  %v81 = vpop.permute.xlu0 %80
  %83 = vset.pattern.permute.xlu0 0
  %84 = vperm.xlu0 %83, %v63
  %v85 = vpop.permute.xlu0 %84
  %87 = vset.pattern.permute.xlu0 0
  %88 = vperm.xlu0 %87, %v64
  %v89 = vpop.permute.xlu0 %88
  %91 = vset.pattern.permute.xlu0 0
  %92 = vperm.xlu0 %91, %v65
  %v93 = vpop.permute.xlu0 %92
  %95 = vset.pattern.permute.xlu0 0
  %96 = vperm.xlu0 %95, %v66
  %v97 = vpop.permute.xlu0 %96
  %v99 = vmul.f32 %v69, %v35
  %v100 = vmul.f32 %v73, %v36
  %v101 = vmul.f32 %v77, %v37
  %v102 = vmul.f32 %v81, %v38
  %v103 = vmul.f32 %v85, %v39
  %v104 = vmul.f32 %v89, %v40
  %v105 = vmul.f32 %v93, %v41
  %v106 = vmul.f32 %v97, %v42
  %v107 = vld [vmem:[%s2] sm:$0x1]
  %v108 = vld [vmem:[%s2 + $0x1] sm:$0x1]
  %v109 = vld [vmem:[%s2 + $0x2] sm:$0x1]
  %v110 = vld [vmem:[%s2 + $0x3] sm:$0x1]
  %v111 = vld [vmem:[%s2 + $0x4] sm:$0x1]
  %v112 = vld [vmem:[%s2 + $0x5] sm:$0x1]
  %v113 = vld [vmem:[%s2 + $0x6] sm:$0x1]
  %v114 = vld [vmem:[%s2 + $0x7] sm:$0x1]
  %v123 = vperm.slane %v107, 0
  %v124 = vperm.slane %v108, 0
  %v125 = vperm.slane %v109, 0
  %v126 = vperm.slane %v110, 0
  %v127 = vperm.slane %v111, 0
  %v128 = vperm.slane %v112, 0
  %v129 = vperm.slane %v113, 0
  %v130 = vperm.slane %v114, 0
  %131 = vset.pattern.permute.xlu0 0
  %132 = vperm.xlu0 %131, %v123
  %v133 = vpop.permute.xlu0 %132
  %135 = vset.pattern.permute.xlu0 0
  %136 = vperm.xlu0 %135, %v124
  %v137 = vpop.permute.xlu0 %136
  %139 = vset.pattern.permute.xlu0 0
  %140 = vperm.xlu0 %139, %v125
  %v141 = vpop.permute.xlu0 %140
  %143 = vset.pattern.permute.xlu0 0
  %144 = vperm.xlu0 %143, %v126
  %v145 = vpop.permute.xlu0 %144
  %147 = vset.pattern.permute.xlu0 0
  %148 = vperm.xlu0 %147, %v127
  %v149 = vpop.permute.xlu0 %148
  %151 = vset.pattern.permute.xlu0 0
  %152 = vperm.xlu0 %151, %v128
  %v153 = vpop.permute.xlu0 %152
  %155 = vset.pattern.permute.xlu0 0
  %156 = vperm.xlu0 %155, %v129
  %v157 = vpop.permute.xlu0 %156
  %159 = vset.pattern.permute.xlu0 0
  %160 = vperm.xlu0 %159, %v130
  %v161 = vpop.permute.xlu0 %160
  %v163 = vadd.f32 %v99, %v133
  %v164 = vadd.f32 %v100, %v137
  %v165 = vadd.f32 %v101, %v141
  %v166 = vadd.f32 %v102, %v145
  %v167 = vadd.f32 %v103, %v149
  %v168 = vadd.f32 %v104, %v153
  %v169 = vadd.f32 %v105, %v157
  %v170 = vadd.f32 %v106, %v161
  %v171 = vld [vmem:[%s3] sm:$0x1]
  %v172 = vld [vmem:[%s3 + $0x1] sm:$0x1]
  %v173 = vld [vmem:[%s3 + $0x2] sm:$0x1]
  %v174 = vld [vmem:[%s3 + $0x3] sm:$0x1]
  %v175 = vld [vmem:[%s3 + $0x4] sm:$0x1]
  %v176 = vld [vmem:[%s3 + $0x5] sm:$0x1]
  %v177 = vld [vmem:[%s3 + $0x6] sm:$0x1]
  %v178 = vld [vmem:[%s3 + $0x7] sm:$0x1]
  %v187 = vperm.slane %v171, 0
  %v188 = vperm.slane %v172, 0
  %v189 = vperm.slane %v173, 0
  %v190 = vperm.slane %v174, 0
  %v191 = vperm.slane %v175, 0
  %v192 = vperm.slane %v176, 0
  %v193 = vperm.slane %v177, 0
  %v194 = vperm.slane %v178, 0
  %195 = vset.pattern.permute.xlu0 0
  %196 = vperm.xlu0 %195, %v187
  %v197 = vpop.permute.xlu0 %196
  %199 = vset.pattern.permute.xlu0 0
  %200 = vperm.xlu0 %199, %v188
  %v201 = vpop.permute.xlu0 %200
  %203 = vset.pattern.permute.xlu0 0
  %204 = vperm.xlu0 %203, %v189
  %v205 = vpop.permute.xlu0 %204
  %207 = vset.pattern.permute.xlu0 0
  %208 = vperm.xlu0 %207, %v190
  %v209 = vpop.permute.xlu0 %208
  %211 = vset.pattern.permute.xlu0 0
  %212 = vperm.xlu0 %211, %v191
  %v213 = vpop.permute.xlu0 %212
  %215 = vset.pattern.permute.xlu0 0
  %216 = vperm.xlu0 %215, %v192
  %v217 = vpop.permute.xlu0 %216
  %219 = vset.pattern.permute.xlu0 0
  %220 = vperm.xlu0 %219, %v193
  %v221 = vpop.permute.xlu0 %220
  %223 = vset.pattern.permute.xlu0 0
  %224 = vperm.xlu0 %223, %v194
  %v225 = vpop.permute.xlu0 %224
  %v227 = vmul.f32 %v197, %v35
  %v228 = vmul.f32 %v201, %v36
  %v229 = vmul.f32 %v205, %v37
  %v230 = vmul.f32 %v209, %v38
  %v231 = vmul.f32 %v213, %v39
  %v232 = vmul.f32 %v217, %v40
  %v233 = vmul.f32 %v221, %v41
  %v234 = vmul.f32 %v225, %v42
  %v235 = vld [vmem:[%s4] sm:$0x1]
  %v236 = vld [vmem:[%s4 + $0x1] sm:$0x1]
  %v237 = vld [vmem:[%s4 + $0x2] sm:$0x1]
  %v238 = vld [vmem:[%s4 + $0x3] sm:$0x1]
  %v239 = vld [vmem:[%s4 + $0x4] sm:$0x1]
  %v240 = vld [vmem:[%s4 + $0x5] sm:$0x1]
  %v241 = vld [vmem:[%s4 + $0x6] sm:$0x1]
  %v242 = vld [vmem:[%s4 + $0x7] sm:$0x1]
  %v251 = vperm.slane %v235, 0
  %v252 = vperm.slane %v236, 0
  %v253 = vperm.slane %v237, 0
  %v254 = vperm.slane %v238, 0
  %v255 = vperm.slane %v239, 0
  %v256 = vperm.slane %v240, 0
  %v257 = vperm.slane %v241, 0
  %v258 = vperm.slane %v242, 0
  %259 = vset.pattern.permute.xlu0 0
  %260 = vperm.xlu0 %259, %v251
  %v261 = vpop.permute.xlu0 %260
  %263 = vset.pattern.permute.xlu0 0
  %264 = vperm.xlu0 %263, %v252
  %v265 = vpop.permute.xlu0 %264
  %267 = vset.pattern.permute.xlu0 0
  %268 = vperm.xlu0 %267, %v253
  %v269 = vpop.permute.xlu0 %268
  %271 = vset.pattern.permute.xlu0 0
  %272 = vperm.xlu0 %271, %v254
  %v273 = vpop.permute.xlu0 %272
  %275 = vset.pattern.permute.xlu0 0
  %276 = vperm.xlu0 %275, %v255
  %v277 = vpop.permute.xlu0 %276
  %279 = vset.pattern.permute.xlu0 0
  %280 = vperm.xlu0 %279, %v256
  %v281 = vpop.permute.xlu0 %280
  %283 = vset.pattern.permute.xlu0 0
  %284 = vperm.xlu0 %283, %v257
  %v285 = vpop.permute.xlu0 %284
  %287 = vset.pattern.permute.xlu0 0
  %288 = vperm.xlu0 %287, %v258
  %v289 = vpop.permute.xlu0 %288
  %v291 = vadd.f32 %v227, %v261
  %v292 = vadd.f32 %v228, %v265
  %v293 = vadd.f32 %v229, %v269
  %v294 = vadd.f32 %v230, %v273
  %v295 = vadd.f32 %v231, %v277
  %v296 = vadd.f32 %v232, %v281
  %v297 = vadd.f32 %v233, %v285
  %v298 = vadd.f32 %v234, %v289
  %v299 = vld [vmem:[%s5] sm:$0xff]
  %v300 = vld [vmem:[%s5 + $0x8] sm:$0xff]
  %v301 = vld [vmem:[%s5 + $0x10] sm:$0xff]
  %v302 = vld [vmem:[%s5 + $0x18] sm:$0xff]
  %v303 = vld [vmem:[%s6] sm:$0x1]
  %v305 = vperm.slane %v303, 0
  %vm307 = vcmask 261120
  %v309 = vsel %vm307, %v291, 0
  %v312 = vsel %vm307, %v292, 0
  %v315 = vsel %vm307, %v293, 0
  %v318 = vsel %vm307, %v294, 0
  %v321 = vsel %vm307, %v295, 0
  %v324 = vsel %vm307, %v296, 0
  %v327 = vsel %vm307, %v297, 0
  %v330 = vsel %vm307, %v298, 0
  %332 = vmatpush.msra.mxu0 0.0
  %333 = vmatpush.msra.mxu0 0.0
  %334 = vmatpush.msra.mxu0 0.0
  %335 = vmatpush.msra.mxu0 0.0
  %336 = vmatpush.msra.mxu0 0.0
  %337 = vmatpush.msra.mxu0 0.0
  %338 = vmatpush.msra.mxu0 0.0
  %339 = vmatpush.msra.mxu0 0.0
  %340 = vmatpush.msra.mxu0 0.0
  %341 = vmatpush.msra.mxu0 0.0
  %342 = vmatpush.msra.mxu0 0.0
  %343 = vmatpush.msra.mxu0 0.0
  %344 = vmatpush.msra.mxu0 %v302
  %345 = vmatpush.msra.mxu0 %v301
  %346 = vmatpush.msra.mxu0 %v300
  %347 = vmatpush.msra.mxu0 %v299
  %348 = vmatmul.f32.gmra.mxu0 %v309
  %v349 = vpop.f32.mrf.mxu0
  %v350 = vadd.f32 %v305, %v349
  %351 = vmatmul.f32.gmra.mxu0 %v312
  %v352 = vpop.f32.mrf.mxu0
  %v353 = vadd.f32 %v305, %v352
  %354 = vmatmul.f32.gmra.mxu0 %v315
  %v355 = vpop.f32.mrf.mxu0
  %v356 = vadd.f32 %v305, %v355
  %357 = vmatmul.f32.gmra.mxu0 %v318
  %v358 = vpop.f32.mrf.mxu0
  %v359 = vadd.f32 %v305, %v358
  %360 = vmatmul.f32.gmra.mxu0 %v321
  %v361 = vpop.f32.mrf.mxu0
  %v362 = vadd.f32 %v305, %v361
  %363 = vmatmul.f32.gmra.mxu0 %v324
  %v364 = vpop.f32.mrf.mxu0
  %v365 = vadd.f32 %v305, %v364
  %366 = vmatmul.f32.gmra.mxu0 %v327
  %v367 = vpop.f32.mrf.mxu0
  %v368 = vadd.f32 %v305, %v367
  %369 = vmatmul.f32.gmra.mxu0 %v330
  %v370 = vpop.f32.mrf.mxu0
  %v371 = vadd.f32 %v305, %v370
  %372 = vdwg.mxu0
  %v373 = vmul.f32 %v350, 0.5
  %v374 = vmul.f32 %v353, 0.5
  %v375 = vmul.f32 %v356, 0.5
  %v376 = vmul.f32 %v359, 0.5
  %v377 = vmul.f32 %v362, 0.5
  %v378 = vmul.f32 %v365, 0.5
  %v379 = vmul.f32 %v368, 0.5
  %v380 = vmul.f32 %v371, 0.5
  %v381 = vmul.f32 %v350, 0.044715
  %v382 = vmul.f32 %v353, 0.044715
  %v383 = vmul.f32 %v356, 0.044715
  %v384 = vmul.f32 %v359, 0.044715
  %v385 = vmul.f32 %v362, 0.044715
  %v386 = vmul.f32 %v365, 0.044715
  %v387 = vmul.f32 %v368, 0.044715
  %v388 = vmul.f32 %v371, 0.044715
  %v389 = vmul.f32 %v381, %v350
  %v390 = vmul.f32 %v382, %v353
  %v391 = vmul.f32 %v383, %v356
  %v392 = vmul.f32 %v384, %v359
  %v393 = vmul.f32 %v385, %v362
  %v394 = vmul.f32 %v386, %v365
  %v395 = vmul.f32 %v387, %v368
  %v396 = vmul.f32 %v388, %v371
  %v397 = vmul.f32 %v389, %v350
  %v398 = vmul.f32 %v390, %v353
  %v399 = vmul.f32 %v391, %v356
  %v400 = vmul.f32 %v392, %v359
  %v401 = vmul.f32 %v393, %v362
  %v402 = vmul.f32 %v394, %v365
  %v403 = vmul.f32 %v395, %v368
  %v404 = vmul.f32 %v396, %v371
  %v405 = vadd.f32 %v350, %v397
  %v406 = vadd.f32 %v353, %v398
  %v407 = vadd.f32 %v356, %v399
  %v408 = vadd.f32 %v359, %v400
  %v409 = vadd.f32 %v362, %v401
  %v410 = vadd.f32 %v365, %v402
  %v411 = vadd.f32 %v368, %v403
  %v412 = vadd.f32 %v371, %v404
  %v413 = vmul.f32 %v405, 0.7978846
  %v414 = vmul.f32 %v406, 0.7978846
  %v415 = vmul.f32 %v407, 0.7978846
  %v416 = vmul.f32 %v408, 0.7978846
  %v417 = vmul.f32 %v409, 0.7978846
  %v418 = vmul.f32 %v410, 0.7978846
  %v419 = vmul.f32 %v411, 0.7978846
  %v420 = vmul.f32 %v412, 0.7978846
  %v421 = vtanh.pop %v413
  %v422 = vtanh.pop %v414
  %v423 = vtanh.pop %v415
  %v424 = vtanh.pop %v416
  %v425 = vtanh.pop %v417
  %v426 = vtanh.pop %v418
  %v427 = vtanh.pop %v419
  %v428 = vtanh.pop %v420
  %v429 = vadd.f32 %v421, 1.0
  %v430 = vadd.f32 %v422, 1.0
  %v431 = vadd.f32 %v423, 1.0
  %v432 = vadd.f32 %v424, 1.0
  %v433 = vadd.f32 %v425, 1.0
  %v434 = vadd.f32 %v426, 1.0
  %v435 = vadd.f32 %v427, 1.0
  %v436 = vadd.f32 %v428, 1.0
  %v437 = vmul.f32 %v373, %v429
  %v438 = vmul.f32 %v374, %v430
  %v439 = vmul.f32 %v375, %v431
  %v440 = vmul.f32 %v376, %v432
  %v441 = vmul.f32 %v377, %v433
  %v442 = vmul.f32 %v378, %v434
  %v443 = vmul.f32 %v379, %v435
  %v444 = vmul.f32 %v380, %v436
  %v445 = vld [vmem:[%s7] sm:$0xff]
  %v446 = vld [vmem:[%s7 + $0x8] sm:$0xff]
  %v447 = vld [vmem:[%s7 + $0x10] sm:$0xff]
  %v448 = vld [vmem:[%s7 + $0x18] sm:$0xff]
  %v449 = vld [vmem:[%s7 + $0x20] sm:$0xff]
  %v450 = vld [vmem:[%s7 + $0x28] sm:$0xff]
  %v451 = vld [vmem:[%s7 + $0x30] sm:$0xff]
  %v452 = vld [vmem:[%s7 + $0x38] sm:$0xff]
  %v453 = vld [vmem:[%s7 + $0x40] sm:$0xff]
  %v454 = vld [vmem:[%s7 + $0x48] sm:$0xff]
  %v455 = vld [vmem:[%s7 + $0x50] sm:$0xff]
  %v456 = vld [vmem:[%s7 + $0x58] sm:$0xff]
  %v457 = vld [vmem:[%s7 + $0x60] sm:$0xff]
  %v458 = vld [vmem:[%s7 + $0x68] sm:$0xff]
  %v459 = vld [vmem:[%s7 + $0x70] sm:$0xff]
  %v460 = vld [vmem:[%s7 + $0x78] sm:$0xff]
  %v461 = vld [vmem:[%s8] sm:$0x1]
  %v463 = vperm.slane %v461, 0
  %465 = vmatpush.msra.mxu0 %v460
  %466 = vmatpush.msra.mxu0 %v459
  %467 = vmatpush.msra.mxu0 %v458
  %468 = vmatpush.msra.mxu0 %v457
  %469 = vmatpush.msra.mxu0 %v456
  %470 = vmatpush.msra.mxu0 %v455
  %471 = vmatpush.msra.mxu0 %v454
  %472 = vmatpush.msra.mxu0 %v453
  %473 = vmatpush.msra.mxu0 %v452
  %474 = vmatpush.msra.mxu0 %v451
  %475 = vmatpush.msra.mxu0 %v450
  %476 = vmatpush.msra.mxu0 %v449
  %477 = vmatpush.msra.mxu0 %v448
  %478 = vmatpush.msra.mxu0 %v447
  %479 = vmatpush.msra.mxu0 %v446
  %480 = vmatpush.msra.mxu0 %v445
  %481 = vmatmul.f32.gmra.mxu0 %v437
  %v482 = vpop.f32.mrf.mxu0
  %v483 = vadd.f32 %v463, %v482
  %484 = vmatmul.f32.gmra.mxu0 %v438
  %v485 = vpop.f32.mrf.mxu0
  %v486 = vadd.f32 %v463, %v485
  %487 = vmatmul.f32.gmra.mxu0 %v439
  %v488 = vpop.f32.mrf.mxu0
  %v489 = vadd.f32 %v463, %v488
  %490 = vmatmul.f32.gmra.mxu0 %v440
  %v491 = vpop.f32.mrf.mxu0
  %v492 = vadd.f32 %v463, %v491
  %493 = vmatmul.f32.gmra.mxu0 %v441
  %v494 = vpop.f32.mrf.mxu0
  %v495 = vadd.f32 %v463, %v494
  %496 = vmatmul.f32.gmra.mxu0 %v442
  %v497 = vpop.f32.mrf.mxu0
  %v498 = vadd.f32 %v463, %v497
  %499 = vmatmul.f32.gmra.mxu0 %v443
  %v500 = vpop.f32.mrf.mxu0
  %v501 = vadd.f32 %v463, %v500
  %502 = vmatmul.f32.gmra.mxu0 %v444
  %v503 = vpop.f32.mrf.mxu0
  %v504 = vadd.f32 %v463, %v503
  %505 = vdwg.mxu0
  %v506 = vadd.f32 %v163, %v483
  %v507 = vadd.f32 %v164, %v486
  %v508 = vadd.f32 %v165, %v489
  %v509 = vadd.f32 %v166, %v492
  %v510 = vadd.f32 %v167, %v495
  %v511 = vadd.f32 %v168, %v498
  %v512 = vadd.f32 %v169, %v501
  %v513 = vadd.f32 %v170, %v504
  %514 = vst.msk [vmem:[%s9] sm:$0xff] %vm307, %v506
  %515 = vst.msk [vmem:[%s9 + $0x8] sm:$0xff] %vm307, %v507
  %516 = vst.msk [vmem:[%s9 + $0x10] sm:$0xff] %vm307, %v508
  %517 = vst.msk [vmem:[%s9 + $0x18] sm:$0xff] %vm307, %v509
  %518 = vst.msk [vmem:[%s9 + $0x20] sm:$0xff] %vm307, %v510
  %519 = vst.msk [vmem:[%s9 + $0x28] sm:$0xff] %vm307, %v511
  %520 = vst.msk [vmem:[%s9 + $0x30] sm:$0xff] %vm307, %v512
  %521 = vst.msk [vmem:[%s9 + $0x38] sm:$0xff] %vm307, %v513
  %v522 = vsel %vm307, %v506, 0.0
  %523 = vadd.xlane.f32.xlu0 %v522
  %v524 = vpop.xlane.xlu0 %523
  %v525 = vsel %vm307, %v507, 0.0
  %526 = vadd.xlane.f32.xlu0 %v525
  %v527 = vpop.xlane.xlu0 %526
  %v528 = vsel %vm307, %v508, 0.0
  %529 = vadd.xlane.f32.xlu0 %v528
  %v530 = vpop.xlane.xlu0 %529
  %v531 = vsel %vm307, %v509, 0.0
  %532 = vadd.xlane.f32.xlu0 %v531
  %v533 = vpop.xlane.xlu0 %532
  %v534 = vsel %vm307, %v510, 0.0
  %535 = vadd.xlane.f32.xlu0 %v534
  %v536 = vpop.xlane.xlu0 %535
  %v537 = vsel %vm307, %v511, 0.0
  %538 = vadd.xlane.f32.xlu0 %v537
  %v539 = vpop.xlane.xlu0 %538
  %v540 = vsel %vm307, %v512, 0.0
  %541 = vadd.xlane.f32.xlu0 %v540
  %v542 = vpop.xlane.xlu0 %541
  %v543 = vsel %vm307, %v513, 0.0
  %544 = vadd.xlane.f32.xlu0 %v543
  %v545 = vpop.xlane.xlu0 %544
  %v554 = vlaneseq
  %v555 = vand.u32 %v554, 127
  %v556 = vperm.slane %v524, %v555
  %v557 = vperm.slane %v527, %v555
  %v558 = vperm.slane %v530, %v555
  %v559 = vperm.slane %v533, %v555
  %v560 = vperm.slane %v536, %v555
  %v561 = vperm.slane %v539, %v555
  %v562 = vperm.slane %v542, %v555
  %v563 = vperm.slane %v545, %v555
  %vm564 = vcmask 1041409
  %v565 = vsel %vm564, %v557, %v556
  %vm566 = vcmask 1042434
  %v567 = vsel %vm566, %v558, %v565
  %vm568 = vcmask 1043459
  %v569 = vsel %vm568, %v559, %v567
  %vm570 = vcmask 1044484
  %v571 = vsel %vm570, %v560, %v569
  %vm572 = vcmask 1045509
  %v573 = vsel %vm572, %v561, %v571
  %vm574 = vcmask 1046534
  %v575 = vsel %vm574, %v562, %v573
  %vm576 = vcmask 1047559
  %v577 = vsel %vm576, %v563, %v575
  %vm579 = vcmask 64512
  %v580 = vsel %vm579, %v577, 0.0
  %581 = vadd.xlane.f32.xlu0 %v580
  %v582 = vpop.xlane.xlu0 %581
  %v583 = vmul.f32 %v506, %v506
  %v584 = vmul.f32 %v507, %v507
  %v585 = vmul.f32 %v508, %v508
  %v586 = vmul.f32 %v509, %v509
  %v587 = vmul.f32 %v510, %v510
  %v588 = vmul.f32 %v511, %v511
  %v589 = vmul.f32 %v512, %v512
  %v590 = vmul.f32 %v513, %v513
  %v591 = vsel %vm307, %v583, 0.0
  %592 = vadd.xlane.f32.xlu0 %v591
  %v593 = vpop.xlane.xlu0 %592
  %v594 = vsel %vm307, %v584, 0.0
  %595 = vadd.xlane.f32.xlu0 %v594
  %v596 = vpop.xlane.xlu0 %595
  %v597 = vsel %vm307, %v585, 0.0
  %598 = vadd.xlane.f32.xlu0 %v597
  %v599 = vpop.xlane.xlu0 %598
  %v600 = vsel %vm307, %v586, 0.0
  %601 = vadd.xlane.f32.xlu0 %v600
  %v602 = vpop.xlane.xlu0 %601
  %v603 = vsel %vm307, %v587, 0.0
  %604 = vadd.xlane.f32.xlu0 %v603
  %v605 = vpop.xlane.xlu0 %604
  %v606 = vsel %vm307, %v588, 0.0
  %607 = vadd.xlane.f32.xlu0 %v606
  %v608 = vpop.xlane.xlu0 %607
  %v609 = vsel %vm307, %v589, 0.0
  %610 = vadd.xlane.f32.xlu0 %v609
  %v611 = vpop.xlane.xlu0 %610
  %v612 = vsel %vm307, %v590, 0.0
  %613 = vadd.xlane.f32.xlu0 %v612
  %v614 = vpop.xlane.xlu0 %613
  %v623 = vperm.slane %v593, %v555
  %v624 = vperm.slane %v596, %v555
  %v625 = vperm.slane %v599, %v555
  %v626 = vperm.slane %v602, %v555
  %v627 = vperm.slane %v605, %v555
  %v628 = vperm.slane %v608, %v555
  %v629 = vperm.slane %v611, %v555
  %v630 = vperm.slane %v614, %v555
  %v631 = vsel %vm564, %v624, %v623
  %v632 = vsel %vm566, %v625, %v631
  %v633 = vsel %vm568, %v626, %v632
  %v634 = vsel %vm570, %v627, %v633
  %v635 = vsel %vm572, %v628, %v634
  %v636 = vsel %vm574, %v629, %v635
  %v637 = vsel %vm576, %v630, %v636
  %v639 = vsel %vm579, %v637, 0.0
  %640 = vadd.xlane.f32.xlu0 %v639
  %v641 = vpop.xlane.xlu0 %640
  %v643 = vperm.slane %v582, 0
  %v644 = vperm.slane %v582, 1
  %v645 = vperm.slane %v582, 2
  %v646 = vperm.slane %v582, 3
  %v647 = vperm.slane %v582, 4
  %v648 = vperm.slane %v582, 5
  %v649 = vperm.slane %v582, 6
  %v650 = vperm.slane %v582, 7
  %vm659 = vcmask 0
  %660 = vst.msk [vmem:[%s10] sm:$0x1] %vm659, %v643
  %661 = vst.msk [vmem:[%s10 + $0x1] sm:$0x1] %vm659, %v644
  %662 = vst.msk [vmem:[%s10 + $0x2] sm:$0x1] %vm659, %v645
  %663 = vst.msk [vmem:[%s10 + $0x3] sm:$0x1] %vm659, %v646
  %664 = vst.msk [vmem:[%s10 + $0x4] sm:$0x1] %vm659, %v647
  %665 = vst.msk [vmem:[%s10 + $0x5] sm:$0x1] %vm659, %v648
  %666 = vst.msk [vmem:[%s10 + $0x6] sm:$0x1] %vm659, %v649
  %667 = vst.msk [vmem:[%s10 + $0x7] sm:$0x1] %vm659, %v650
  %v669 = vperm.slane %v641, 0
  %v670 = vperm.slane %v641, 1
  %v671 = vperm.slane %v641, 2
  %v672 = vperm.slane %v641, 3
  %v673 = vperm.slane %v641, 4
  %v674 = vperm.slane %v641, 5
  %v675 = vperm.slane %v641, 6
  %v676 = vperm.slane %v641, 7
  %685 = vst.msk [vmem:[%s11] sm:$0x1] %vm659, %v669
  %686 = vst.msk [vmem:[%s11 + $0x1] sm:$0x1] %vm659, %v670
  %687 = vst.msk [vmem:[%s11 + $0x2] sm:$0x1] %vm659, %v671
  %688 = vst.msk [vmem:[%s11 + $0x3] sm:$0x1] %vm659, %v672
  %689 = vst.msk [vmem:[%s11 + $0x4] sm:$0x1] %vm659, %v673
  %690 = vst.msk [vmem:[%s11 + $0x5] sm:$0x1] %vm659, %v674
  %691 = vst.msk [vmem:[%s11 + $0x6] sm:$0x1] %vm659, %v675
  %692 = vst.msk [vmem:[%s11 + $0x7] sm:$0x1] %vm659, %v676
  // Predicated region
  $region38: #{encoder1_forward.7} parent=0 // pred_check
    _
  $region39: #{encoder1_forward.7} parent=0 // pred_check_branch
    %694 = sbr.rel (0) target = $region41
  $region40: #{encoder1_forward.7} parent=0 // pred_region
    _
  $region41: #{encoder1_forward.7} parent=0 // pred_fallthru
    _
  // Predicated region
  $region42: #{encoder1_forward.7} parent=0 // pred_check
    _
  $region43: #{encoder1_forward.7} parent=0 // pred_check_branch
    %696 = sbr.rel (0) target = $region45
  $region44: #{encoder1_forward.7} parent=0 // pred_region
    _
  $region45: #{encoder1_forward.7} parent=0 // pred_fallthru
    _
  // Predicated region
  $region46: #{encoder1_forward.7} parent=0 // pred_check
    _
  $region47: #{encoder1_forward.7} parent=0 // pred_check_branch
    %698 = sbr.rel (0) target = $region49
  $region48: #{encoder1_forward.7} parent=0 // pred_region
    _
  $region49: #{encoder1_forward.7} parent=0 // pred_fallthru
    _
  // Predicated region
  $region50: #{encoder1_forward.7} parent=0 // pred_check
    _
  $region51: #{encoder1_forward.7} parent=0 // pred_check_branch
    %700 = sbr.rel (0) target = $region53
  $region52: #{encoder1_forward.7} parent=0 // pred_region
    _
  $region53: #{encoder1_forward.7} parent=0 // pred_fallthru
    _
  // Predicated region
  $region54: #{encoder1_forward.7} parent=0 // pred_check
    _
  $region55: #{encoder1_forward.7} parent=0 // pred_check_branch
    %702 = sbr.rel (0) target = $region57
  $region56: #{encoder1_forward.7} parent=0 // pred_region
    _
  $region57: #{encoder1_forward.7} parent=0 // pred_fallthru
    _
  // Predicated region
  $region58: #{encoder1_forward.7} parent=0 // pred_check
    _
  $region59: #{encoder1_forward.7} parent=0 // pred_check_branch
    %704 = sbr.rel (0) target = $region61
  $region60: #{encoder1_forward.7} parent=0 // pred_region
    _
  $region61: #{encoder1_forward.7} parent=0 // pred_fallthru
    _

</llo_original>
